<compile_context>
chip_gen: v5e
topology: v5e:2x2
jax: 0.10.0
libtpu: 0.0.40
codegen_flags: <defaults>
</compile_context>

<pallas_src>
import functools

import numpy as np
import jax
import jax.numpy as jnp
from jax.experimental import pallas as pl
from jax.experimental.pallas import tpu as pltpu

WINDOW_SIZE = 11
SIGMA = 1.5
C1 = 0.01 ** 2
C2 = 0.03 ** 2


def _gaussian_1d(window_size, sigma):
    # Matches torch gaussian(window_size, sigma) (normalized 1D Gaussian).
    xs = np.arange(window_size, dtype=np.float64)
    g = np.exp(-((xs - window_size // 2) ** 2) / (2.0 * sigma * sigma))
    return (g / g.sum()).astype(np.float32)


@functools.lru_cache(maxsize=None)
def _toeplitz_band(dim, window_size, sigma):
    """(dim, dim) banded matrix T with T[r, s] = g[s - r + pad].

    T @ x applies the 1D Gaussian down the rows of x with zero padding of
    size pad -- identical to torch conv2d(padding=window_size // 2) along
    that axis.  (x @ T.T applies it along the columns.)

    TODO(synk): review #2 - exploit the 11-wide band (store/contract only the
    3 near-diagonal 128-blocks) once strip-tiling for large H/W lands.
    """
    g = _gaussian_1d(window_size, sigma)
    pad = window_size // 2
    m = np.zeros((dim, dim), dtype=np.float32)
    for r in range(dim):
        for s in range(max(0, r - pad), min(dim, r + pad + 1)):
            m[r, s] = g[s - r + pad]
    return m


def _ssim_map_from_moments(mu1, mu2, e11, e22, e12):
    mu1_sq = mu1 * mu1
    mu2_sq = mu2 * mu2
    mu1_mu2 = mu1 * mu2
    sigma1_sq = e11 - mu1_sq
    sigma2_sq = e22 - mu2_sq
    sigma12 = e12 - mu1_mu2
    num = (2.0 * mu1_mu2 + C1) * (2.0 * sigma12 + C2)
    den = (mu1_sq + mu2_sq + C1) * (sigma1_sq + sigma2_sq + C2)
    # review #8: divide via the (exact) reciprocal path.
    return num * pl.reciprocal(den, approx=False)


def _ssim_fused_kernel(gv_ref, gh_ref, x_ref, y_ref, sum_ref):
    """Fused path: 2 MXU matmuls for all 5 blurred moments of P planes."""
    P, H, W = x_ref.shape
    gv = gv_ref[...]                     # (H, H) vertical Gaussian band
    gh = gh_ref[...]                     # (W, W) horizontal Gaussian band
    a = x_ref[...]                       # (P, H, W) `infer` planes
    b = y_ref[...]                       # (P, H, W) `gt` planes

    # Five quantities to blur, each (P, H, W); quantity-major chunk order.
    quants = (a, b, a * a, b * b, a * b)

    # Lane-stack all 5*P (H, W) maps into one (H, 5*P*W) slab (review #1/#6).
    cols = [quants[q][p] for q in range(5) for p in range(P)]
    slab_v = jnp.concatenate(cols, axis=1)                        # (H, 5PW)

    # Vertical Gaussian pass: ONE MXU matmul.
    v = jnp.dot(gv, slab_v, preferred_element_type=jnp.float32)   # (H, 5PW)

    # Re-stack the lane chunks along sublanes for the horizontal pass.
    rows = [v[:, j * W:(j + 1) * W] for j in range(5 * P)]
    slab_h = jnp.concatenate(rows, axis=0)                        # (5PH, W)

    # Horizontal Gaussian pass: ONE MXU matmul.
    blurred = jnp.dot(slab_h, gh, preferred_element_type=jnp.float32)

    PH = P * H
    mu1 = blurred[0 * PH:1 * PH]
    mu2 = blurred[1 * PH:2 * PH]
    e11 = blurred[2 * PH:3 * PH]
    e22 = blurred[3 * PH:4 * PH]
    e12 = blurred[4 * PH:5 * PH]

    ssim_map = _ssim_map_from_moments(mu1, mu2, e11, e22, e12)    # (PH, W)

    # Lane-dense per-step partial sum (review #9).
    sum_ref[...] = jnp.zeros_like(sum_ref) + jnp.sum(ssim_map)


def _ssim_simple_kernel(gv_ref, gh_ref, x_ref, y_ref, sum_ref):
    """Fallback path (per-plane separable blurs, no lane re-stacking)."""
    P, _, _ = x_ref.shape
    gv = gv_ref[...]
    gh = gh_ref[...]

    def blur(p):
        t = jnp.dot(gv, p, preferred_element_type=jnp.float32)
        return jnp.dot(t, gh, preferred_element_type=jnp.float32)

    total = jnp.float32(0.0)
    for p in range(P):
        a = x_ref[p]
        b = y_ref[p]
        ssim_map = _ssim_map_from_moments(
            blur(a), blur(b), blur(a * a), blur(b * b), blur(a * b))
        total = total + jnp.sum(ssim_map)
    sum_ref[...] = jnp.zeros_like(sum_ref) + total


def _vmem_capacity_bytes():
    """Per-core VMEM capacity; conservative fallback if the query fails."""
    try:
        cap = int(pltpu.get_tpu_info().vmem_capacity_bytes)
        if cap > 0:
            return cap
    except Exception:
        pass
    return 64 * 1024 * 1024          # v7x per-TensorCore VMEM (smallest gen)


def _est_vmem_bytes(P, H, W):
    """Rough per-grid-step VMEM footprint of the fused kernel (f32)."""
    plane = H * W * 4
    io = 2 * 2 * P * plane           # 2 inputs, double-buffered
    bands = 2 * (H * H + W * W) * 4  # band matrices, double-buffered
    temps = 48 * P * plane           # stacked slabs, matmul results, SSIM temps
    return io + bands + temps + (2 << 20)


def _choose_pack(N, H, W, budget):
    """Planes per grid step: divisor of N fitting `budget`; prefer >=2 grid
    steps so the parallel axis balances across v7x's two TensorCores."""
    divisors = [d for d in range(1, N + 1) if N % d == 0]
    fits = [d for d in divisors if _est_vmem_bytes(d, H, W) <= budget] or [1]
    multi = [d for d in fits if N // d >= 2]
    return max(multi) if multi else max(fits)


def cal_ssim_loss(infer, gt, window_size=WINDOW_SIZE, size_average=True):
    """JAX/Pallas equivalent of cal_ssim_loss.forward (size_average=True)."""
    # TODO(synk): size_average=False (per-image mean) path is not implemented;
    # the module's default (and only constructed config) uses size_average=True.
    assert size_average, "only size_average=True is implemented"

    infer = infer.astype(jnp.float32)
    gt = gt.astype(jnp.float32)
    B, C, H, W = infer.shape
    N = B * C

    gv = jnp.asarray(_toeplitz_band(H, window_size, SIGMA))        # (H, H)
    gh = jnp.asarray(_toeplitz_band(W, window_size, SIGMA).T)      # (W, W)

    x = infer.reshape(N, H, W)
    y = gt.reshape(N, H, W)

    cap = _vmem_capacity_bytes()                                   # review #5
    budget = max(32 * 1024 * 1024, min(int(cap * 0.85), 110 * 1024 * 1024))
    P = _choose_pack(N, H, W, budget)                              # review #6/#10
    G = N // P
    vmem_limit = int(min(max(_est_vmem_bytes(P, H, W), 32 * 1024 * 1024),
                         budget))

    def run(kernel):
        return pl.pallas_call(
            kernel,
            out_shape=jax.ShapeDtypeStruct((G, 1, 128), jnp.float32),
            grid_spec=pltpu.PrefetchScalarGridSpec(
                num_scalar_prefetch=0,
                grid=(G,),
                in_specs=[
                    # TODO(synk): review #4 - single-buffer these constant-index
                    # band inputs (pipeline_mode / one-shot DMA into scratch);
                    # double-buffering them is wasted VMEM for large W.
                    pl.BlockSpec((H, H), lambda g: (0, 0)),        # G_v (resident)
                    pl.BlockSpec((W, W), lambda g: (0, 0)),        # G_h (resident)
                    pl.BlockSpec((P, H, W), lambda g: (g, 0, 0)),  # infer planes
                    pl.BlockSpec((P, H, W), lambda g: (g, 0, 0)),  # gt planes
                ],
                out_specs=pl.BlockSpec((1, 1, 128), lambda g: (g, 0, 0)),
            ),
            compiler_params=pltpu.CompilerParams(
                dimension_semantics=("parallel",),
                vmem_limit_bytes=vmem_limit,
            ),
        )(gv, gh, x, y)

    # TODO(synk): review #2/#3 - band-blocked Toeplitz contraction plus H-strip
    # tiling with a window//2 = 5-row halo are required before HD-sized planes
    # fit v7x's 64 MiB VMEM; small/medium planes are processed whole per step.
    # TODO(synk): review #7 - optional bf16 matmul path for v5e (needs
    # validation: sigma = E[x^2] - mu^2 is cancellation-sensitive).
    try:
        sums = run(_ssim_fused_kernel)
    except Exception:  # pragma: no cover - conservative Mosaic fallback
        sums = run(_ssim_simple_kernel)

    ssim_value = jnp.sum(sums[:, 0, 0]) / jnp.float32(N * H * W)   # mean()
    return 1.0 - ssim_value


def _reference_loss(infer, gt, window_size=WINDOW_SIZE):
    """Pure-JAX reference mirroring the torch module (grouped conv2d)."""
    infer = infer.astype(jnp.float32)
    gt = gt.astype(jnp.float32)
    _, C, _, _ = infer.shape
    g = _gaussian_1d(window_size, SIGMA)
    w2d = jnp.asarray(np.outer(g, g))[None, None]                  # (1,1,k,k)
    kern = jnp.tile(w2d, (C, 1, 1, 1))                             # (C,1,k,k)
    pad = window_size // 2

    def conv(m):
        return jax.lax.conv_general_dilated(
            m, kern, window_strides=(1, 1),
            padding=[(pad, pad), (pad, pad)],
            dimension_numbers=("NCHW", "OIHW", "NCHW"),
            feature_group_count=C,
            precision=jax.lax.Precision.HIGHEST)

    mu1, mu2 = conv(infer), conv(gt)
    e11, e22, e12 = conv(infer * infer), conv(gt * gt), conv(infer * gt)
    mu1_sq, mu2_sq, mu1_mu2 = mu1 * mu1, mu2 * mu2, mu1 * mu2
    num = (2 * mu1_mu2 + C1) * (2 * (e12 - mu1_mu2) + C2)
    den = (mu1_sq + mu2_sq + C1) * ((e11 - mu1_sq) + (e22 - mu2_sq) + C2)
    return 1.0 - jnp.mean(num / den)


if __name__ == "__main__":
    key = jax.random.PRNGKey(0)
    k1, k2 = jax.random.split(key)
    # NCHW, 3 channels (module default self.channels = 3).
    infer = jax.random.uniform(k1, (2, 3, 16, 16), dtype=jnp.float32)
    gt = jax.random.uniform(k2, (2, 3, 16, 16), dtype=jnp.float32)

    loss = cal_ssim_loss(infer, gt)
    jax.block_until_ready(loss)

    ref = _reference_loss(infer, gt)
    assert abs(float(loss) - float(ref)) < 5e-3, (float(loss), float(ref))
    print("KERNEL_OK")
</pallas_src>

<mosaic_0001>
module attributes {stable_mosaic.version = 11 : i64} {
  func.func @_ssim_fused_kernel(%arg0: i32, %arg1: memref<16x16xf32, #tpu.memory_space<vmem>>, %arg2: memref<16x16xf32, #tpu.memory_space<vmem>>, %arg3: memref<3x16x16xf32, #tpu.memory_space<vmem>>, %arg4: memref<3x16x16xf32, #tpu.memory_space<vmem>>, %arg5: memref<1x1x128xf32, #tpu.memory_space<vmem>>) attributes {dimension_semantics = [#tpu.dimension_semantics<parallel>], iteration_bounds = array<i64: 2>, scalar_prefetch = 0 : i64, scratch_operands = 0 : i64, tpu.core_type = #tpu.core_type<tc>, window_params = [{pipeline_mode = #tpu.pipeline_mode<synchronous>, transform_indices = @transform_0, window_bounds = array<i64: 16, 16>}, {pipeline_mode = #tpu.pipeline_mode<synchronous>, transform_indices = @transform_1, window_bounds = array<i64: 16, 16>}, {transform_indices = @transform_2, window_bounds = array<i64: 3, 16, 16>}, {transform_indices = @transform_3, window_bounds = array<i64: 3, 16, 16>}, {transform_indices = @transform_4, window_bounds = array<i64: 1, 1, 128>}]} {
    %c0 = arith.constant 0 : index
    %c0_0 = arith.constant 0 : index
    %0 = vector.load %arg1[%c0, %c0_0] : memref<16x16xf32, #tpu.memory_space<vmem>>, vector<16x16xf32>
    %c0_1 = arith.constant 0 : index
    %c0_2 = arith.constant 0 : index
    %1 = vector.load %arg2[%c0_1, %c0_2] : memref<16x16xf32, #tpu.memory_space<vmem>>, vector<16x16xf32>
    %c0_3 = arith.constant 0 : index
    %c0_4 = arith.constant 0 : index
    %c0_5 = arith.constant 0 : index
    %2 = vector.load %arg3[%c0_3, %c0_4, %c0_5] : memref<3x16x16xf32, #tpu.memory_space<vmem>>, vector<3x16x16xf32>
    %c0_6 = arith.constant 0 : index
    %c0_7 = arith.constant 0 : index
    %c0_8 = arith.constant 0 : index
    %3 = vector.load %arg4[%c0_6, %c0_7, %c0_8] : memref<3x16x16xf32, #tpu.memory_space<vmem>>, vector<3x16x16xf32>
    %4 = arith.mulf %2, %2 : vector<3x16x16xf32>
    %5 = arith.mulf %3, %3 : vector<3x16x16xf32>
    %6 = arith.mulf %2, %3 : vector<3x16x16xf32>
    %7 = vector.extract_strided_slice %2 {offsets = [0, 0, 0], sizes = [1, 16, 16], strides = [1, 1, 1]} : vector<3x16x16xf32> to vector<1x16x16xf32>
    %8 = vector.shape_cast %7 : vector<1x16x16xf32> to vector<16x16xf32>
    %9 = vector.extract_strided_slice %2 {offsets = [1, 0, 0], sizes = [1, 16, 16], strides = [1, 1, 1]} : vector<3x16x16xf32> to vector<1x16x16xf32>
    %10 = vector.shape_cast %9 : vector<1x16x16xf32> to vector<16x16xf32>
    %11 = vector.extract_strided_slice %2 {offsets = [2, 0, 0], sizes = [1, 16, 16], strides = [1, 1, 1]} : vector<3x16x16xf32> to vector<1x16x16xf32>
    %12 = vector.shape_cast %11 : vector<1x16x16xf32> to vector<16x16xf32>
    %13 = vector.extract_strided_slice %3 {offsets = [0, 0, 0], sizes = [1, 16, 16], strides = [1, 1, 1]} : vector<3x16x16xf32> to vector<1x16x16xf32>
    %14 = vector.shape_cast %13 : vector<1x16x16xf32> to vector<16x16xf32>
    %15 = vector.extract_strided_slice %3 {offsets = [1, 0, 0], sizes = [1, 16, 16], strides = [1, 1, 1]} : vector<3x16x16xf32> to vector<1x16x16xf32>
    %16 = vector.shape_cast %15 : vector<1x16x16xf32> to vector<16x16xf32>
    %17 = vector.extract_strided_slice %3 {offsets = [2, 0, 0], sizes = [1, 16, 16], strides = [1, 1, 1]} : vector<3x16x16xf32> to vector<1x16x16xf32>
    %18 = vector.shape_cast %17 : vector<1x16x16xf32> to vector<16x16xf32>
    %19 = vector.extract_strided_slice %4 {offsets = [0, 0, 0], sizes = [1, 16, 16], strides = [1, 1, 1]} : vector<3x16x16xf32> to vector<1x16x16xf32>
    %20 = vector.shape_cast %19 : vector<1x16x16xf32> to vector<16x16xf32>
    %21 = vector.extract_strided_slice %4 {offsets = [1, 0, 0], sizes = [1, 16, 16], strides = [1, 1, 1]} : vector<3x16x16xf32> to vector<1x16x16xf32>
    %22 = vector.shape_cast %21 : vector<1x16x16xf32> to vector<16x16xf32>
    %23 = vector.extract_strided_slice %4 {offsets = [2, 0, 0], sizes = [1, 16, 16], strides = [1, 1, 1]} : vector<3x16x16xf32> to vector<1x16x16xf32>
    %24 = vector.shape_cast %23 : vector<1x16x16xf32> to vector<16x16xf32>
    %25 = vector.extract_strided_slice %5 {offsets = [0, 0, 0], sizes = [1, 16, 16], strides = [1, 1, 1]} : vector<3x16x16xf32> to vector<1x16x16xf32>
    %26 = vector.shape_cast %25 : vector<1x16x16xf32> to vector<16x16xf32>
    %27 = vector.extract_strided_slice %5 {offsets = [1, 0, 0], sizes = [1, 16, 16], strides = [1, 1, 1]} : vector<3x16x16xf32> to vector<1x16x16xf32>
    %28 = vector.shape_cast %27 : vector<1x16x16xf32> to vector<16x16xf32>
    %29 = vector.extract_strided_slice %5 {offsets = [2, 0, 0], sizes = [1, 16, 16], strides = [1, 1, 1]} : vector<3x16x16xf32> to vector<1x16x16xf32>
    %30 = vector.shape_cast %29 : vector<1x16x16xf32> to vector<16x16xf32>
    %31 = vector.extract_strided_slice %6 {offsets = [0, 0, 0], sizes = [1, 16, 16], strides = [1, 1, 1]} : vector<3x16x16xf32> to vector<1x16x16xf32>
    %32 = vector.shape_cast %31 : vector<1x16x16xf32> to vector<16x16xf32>
    %33 = vector.extract_strided_slice %6 {offsets = [1, 0, 0], sizes = [1, 16, 16], strides = [1, 1, 1]} : vector<3x16x16xf32> to vector<1x16x16xf32>
    %34 = vector.shape_cast %33 : vector<1x16x16xf32> to vector<16x16xf32>
    %35 = vector.extract_strided_slice %6 {offsets = [2, 0, 0], sizes = [1, 16, 16], strides = [1, 1, 1]} : vector<3x16x16xf32> to vector<1x16x16xf32>
    %36 = vector.shape_cast %35 : vector<1x16x16xf32> to vector<16x16xf32>
    %37 = tpu.concatenate %8, %10, %12, %14, %16, %18, %20, %22, %24, %26, %28, %30, %32, %34, %36 in 1 : vector<16x16xf32>, vector<16x16xf32>, vector<16x16xf32>, vector<16x16xf32>, vector<16x16xf32>, vector<16x16xf32>, vector<16x16xf32>, vector<16x16xf32>, vector<16x16xf32>, vector<16x16xf32>, vector<16x16xf32>, vector<16x16xf32>, vector<16x16xf32>, vector<16x16xf32>, vector<16x16xf32> -> vector<16x240xf32>
    %cst = arith.constant dense<0.000000e+00> : vector<16x240xf32>
    %38 = tpu.matmul %0, %37, %cst {dimension_numbers = #tpu.dot_dimension_numbers<[1], [0], [0], [1], [0, 0, 1, 1], [], []>} : vector<16x16xf32>, vector<16x240xf32>, vector<16x240xf32> -> vector<16x240xf32>
    %39 = vector.extract_strided_slice %38 {offsets = [0, 0], sizes = [16, 16], strides = [1, 1]} : vector<16x240xf32> to vector<16x16xf32>
    %40 = vector.extract_strided_slice %38 {offsets = [0, 16], sizes = [16, 16], strides = [1, 1]} : vector<16x240xf32> to vector<16x16xf32>
    %41 = vector.extract_strided_slice %38 {offsets = [0, 32], sizes = [16, 16], strides = [1, 1]} : vector<16x240xf32> to vector<16x16xf32>
    %42 = vector.extract_strided_slice %38 {offsets = [0, 48], sizes = [16, 16], strides = [1, 1]} : vector<16x240xf32> to vector<16x16xf32>
    %43 = vector.extract_strided_slice %38 {offsets = [0, 64], sizes = [16, 16], strides = [1, 1]} : vector<16x240xf32> to vector<16x16xf32>
    %44 = vector.extract_strided_slice %38 {offsets = [0, 80], sizes = [16, 16], strides = [1, 1]} : vector<16x240xf32> to vector<16x16xf32>
    %45 = vector.extract_strided_slice %38 {offsets = [0, 96], sizes = [16, 16], strides = [1, 1]} : vector<16x240xf32> to vector<16x16xf32>
    %46 = vector.extract_strided_slice %38 {offsets = [0, 112], sizes = [16, 16], strides = [1, 1]} : vector<16x240xf32> to vector<16x16xf32>
    %47 = vector.extract_strided_slice %38 {offsets = [0, 128], sizes = [16, 16], strides = [1, 1]} : vector<16x240xf32> to vector<16x16xf32>
    %48 = vector.extract_strided_slice %38 {offsets = [0, 144], sizes = [16, 16], strides = [1, 1]} : vector<16x240xf32> to vector<16x16xf32>
    %49 = vector.extract_strided_slice %38 {offsets = [0, 160], sizes = [16, 16], strides = [1, 1]} : vector<16x240xf32> to vector<16x16xf32>
    %50 = vector.extract_strided_slice %38 {offsets = [0, 176], sizes = [16, 16], strides = [1, 1]} : vector<16x240xf32> to vector<16x16xf32>
    %51 = vector.extract_strided_slice %38 {offsets = [0, 192], sizes = [16, 16], strides = [1, 1]} : vector<16x240xf32> to vector<16x16xf32>
    %52 = vector.extract_strided_slice %38 {offsets = [0, 208], sizes = [16, 16], strides = [1, 1]} : vector<16x240xf32> to vector<16x16xf32>
    %53 = vector.extract_strided_slice %38 {offsets = [0, 224], sizes = [16, 16], strides = [1, 1]} : vector<16x240xf32> to vector<16x16xf32>
    %54 = tpu.concatenate %39, %40, %41, %42, %43, %44, %45, %46, %47, %48, %49, %50, %51, %52, %53 in 0 : vector<16x16xf32>, vector<16x16xf32>, vector<16x16xf32>, vector<16x16xf32>, vector<16x16xf32>, vector<16x16xf32>, vector<16x16xf32>, vector<16x16xf32>, vector<16x16xf32>, vector<16x16xf32>, vector<16x16xf32>, vector<16x16xf32>, vector<16x16xf32>, vector<16x16xf32>, vector<16x16xf32> -> vector<240x16xf32>
    %cst_9 = arith.constant dense<0.000000e+00> : vector<240x16xf32>
    %55 = tpu.matmul %54, %1, %cst_9 {dimension_numbers = #tpu.dot_dimension_numbers<[1], [0], [0], [1], [0, 0, 1, 1], [], []>} : vector<240x16xf32>, vector<16x16xf32>, vector<240x16xf32> -> vector<240x16xf32>
    %56 = vector.extract_strided_slice %55 {offsets = [0, 0], sizes = [48, 16], strides = [1, 1]} : vector<240x16xf32> to vector<48x16xf32>
    %57 = vector.extract_strided_slice %55 {offsets = [48, 0], sizes = [48, 16], strides = [1, 1]} : vector<240x16xf32> to vector<48x16xf32>
    %58 = vector.extract_strided_slice %55 {offsets = [96, 0], sizes = [48, 16], strides = [1, 1]} : vector<240x16xf32> to vector<48x16xf32>
    %59 = vector.extract_strided_slice %55 {offsets = [144, 0], sizes = [48, 16], strides = [1, 1]} : vector<240x16xf32> to vector<48x16xf32>
    %60 = vector.extract_strided_slice %55 {offsets = [192, 0], sizes = [48, 16], strides = [1, 1]} : vector<240x16xf32> to vector<48x16xf32>
    %61 = arith.mulf %56, %56 : vector<48x16xf32>
    %62 = arith.mulf %57, %57 : vector<48x16xf32>
    %63 = arith.mulf %56, %57 : vector<48x16xf32>
    %64 = arith.subf %58, %61 : vector<48x16xf32>
    %65 = arith.subf %59, %62 : vector<48x16xf32>
    %66 = arith.subf %60, %63 : vector<48x16xf32>
    %cst_10 = arith.constant 2.000000e+00 : f32
    %67 = vector.broadcast %cst_10 : f32 to vector<48x16xf32>
    %68 = arith.mulf %67, %63 : vector<48x16xf32>
    %cst_11 = arith.constant 9.99999974E-5 : f32
    %69 = vector.broadcast %cst_11 : f32 to vector<48x16xf32>
    %70 = arith.addf %68, %69 : vector<48x16xf32>
    %cst_12 = arith.constant 2.000000e+00 : f32
    %71 = vector.broadcast %cst_12 : f32 to vector<48x16xf32>
    %72 = arith.mulf %71, %66 : vector<48x16xf32>
    %cst_13 = arith.constant 8.99999984E-4 : f32
    %73 = vector.broadcast %cst_13 : f32 to vector<48x16xf32>
    %74 = arith.addf %72, %73 : vector<48x16xf32>
    %75 = arith.mulf %70, %74 : vector<48x16xf32>
    %76 = arith.addf %61, %62 : vector<48x16xf32>
    %cst_14 = arith.constant 9.99999974E-5 : f32
    %77 = vector.broadcast %cst_14 : f32 to vector<48x16xf32>
    %78 = arith.addf %76, %77 : vector<48x16xf32>
    %79 = arith.addf %64, %65 : vector<48x16xf32>
    %cst_15 = arith.constant 8.99999984E-4 : f32
    %80 = vector.broadcast %cst_15 : f32 to vector<48x16xf32>
    %81 = arith.addf %79, %80 : vector<48x16xf32>
    %82 = arith.mulf %78, %81 : vector<48x16xf32>
    %83 = tpu.reciprocal %82 : vector<48x16xf32> -> vector<48x16xf32>
    %84 = arith.mulf %75, %83 : vector<48x16xf32>
    %cst_16 = arith.constant 0.000000e+00 : f32
    %85 = vector.broadcast %cst_16 : f32 to vector<1x1x128xf32>
    %86 = vector.shape_cast %84 : vector<48x16xf32> to vector<1x48x16xf32>
    %cst_17 = arith.constant dense<0.000000e+00> : vector<1xf32>
    %87 = vector.multi_reduction <add>, %86, %cst_17 [1, 2] : vector<1x48x16xf32> to vector<1xf32>
    %88 = vector.shape_cast %87 : vector<1xf32> to vector<1x1x1xf32>
    %89 = vector.extract %88[0, 0, 0] : f32 from vector<1x1x1xf32>
    %90 = vector.broadcast %89 : f32 to vector<1x1x128xf32>
    %91 = arith.addf %85, %90 : vector<1x1x128xf32>
    %c0_18 = arith.constant 0 : index
    %c0_19 = arith.constant 0 : index
    %c0_20 = arith.constant 0 : index
    %92 = vector.load %arg5[%c0_18, %c0_19, %c0_20] : memref<1x1x128xf32, #tpu.memory_space<vmem>>, vector<1x1x128xf32>
    tpu.vector_store %arg5[%c0_18, %c0_19, %c0_20], %91 {strides = array<i32>} : memref<1x1x128xf32, #tpu.memory_space<vmem>>, vector<1x1x128xf32>,
    return
  }
  func.func @transform_0(%arg0: i32) -> (i32, i32) {
    %c0_i32 = arith.constant 0 : i32
    %c0_i32_0 = arith.constant 0 : i32
    %c0_i32_1 = arith.constant 0 : i32
    return %c0_i32, %c0_i32_0 : i32, i32
  }
  func.func @transform_1(%arg0: i32) -> (i32, i32) {
    %c0_i32 = arith.constant 0 : i32
    %c0_i32_0 = arith.constant 0 : i32
    %c0_i32_1 = arith.constant 0 : i32
    return %c0_i32, %c0_i32_0 : i32, i32
  }
  func.func @transform_2(%arg0: i32) -> (i32, i32, i32) {
    %c0_i32 = arith.constant 0 : i32
    %c0_i32_0 = arith.constant 0 : i32
    %c0_i32_1 = arith.constant 0 : i32
    return %arg0, %c0_i32, %c0_i32_0 : i32, i32, i32
  }
  func.func @transform_3(%arg0: i32) -> (i32, i32, i32) {
    %c0_i32 = arith.constant 0 : i32
    %c0_i32_0 = arith.constant 0 : i32
    %c0_i32_1 = arith.constant 0 : i32
    return %arg0, %c0_i32, %c0_i32_0 : i32, i32, i32
  }
  func.func @transform_4(%arg0: i32) -> (i32, i32, i32) {
    %c0_i32 = arith.constant 0 : i32
    %c0_i32_0 = arith.constant 0 : i32
    %c0_i32_1 = arith.constant 0 : i32
    return %arg0, %c0_i32, %c0_i32_0 : i32, i32, i32
  }
}

module attributes {stable_mosaic.version = 11 : i64} {
  func.func @_ssim_simple_kernel(%arg0: i32, %arg1: memref<16x16xf32, #tpu.memory_space<vmem>>, %arg2: memref<16x16xf32, #tpu.memory_space<vmem>>, %arg3: memref<3x16x16xf32, #tpu.memory_space<vmem>>, %arg4: memref<3x16x16xf32, #tpu.memory_space<vmem>>, %arg5: memref<1x1x128xf32, #tpu.memory_space<vmem>>) attributes {dimension_semantics = [#tpu.dimension_semantics<parallel>], iteration_bounds = array<i64: 2>, scalar_prefetch = 0 : i64, scratch_operands = 0 : i64, tpu.core_type = #tpu.core_type<tc>, window_params = [{pipeline_mode = #tpu.pipeline_mode<synchronous>, transform_indices = @transform_0, window_bounds = array<i64: 16, 16>}, {pipeline_mode = #tpu.pipeline_mode<synchronous>, transform_indices = @transform_1, window_bounds = array<i64: 16, 16>}, {transform_indices = @transform_2, window_bounds = array<i64: 3, 16, 16>}, {transform_indices = @transform_3, window_bounds = array<i64: 3, 16, 16>}, {transform_indices = @transform_4, window_bounds = array<i64: 1, 1, 128>}]} {
    %c0 = arith.constant 0 : index
    %c0_0 = arith.constant 0 : index
    %0 = vector.load %arg1[%c0, %c0_0] : memref<16x16xf32, #tpu.memory_space<vmem>>, vector<16x16xf32>
    %c0_1 = arith.constant 0 : index
    %c0_2 = arith.constant 0 : index
    %1 = vector.load %arg2[%c0_1, %c0_2] : memref<16x16xf32, #tpu.memory_space<vmem>>, vector<16x16xf32>
    %c0_3 = arith.constant 0 : index
    %c0_4 = arith.constant 0 : index
    %c0_5 = arith.constant 0 : index
    %2 = vector.load %arg3[%c0_3, %c0_4, %c0_5] : memref<3x16x16xf32, #tpu.memory_space<vmem>>, vector<1x16x16xf32>
    %3 = vector.shape_cast %2 : vector<1x16x16xf32> to vector<16x16xf32>
    %c0_6 = arith.constant 0 : index
    %c0_7 = arith.constant 0 : index
    %c0_8 = arith.constant 0 : index
    %4 = vector.load %arg4[%c0_6, %c0_7, %c0_8] : memref<3x16x16xf32, #tpu.memory_space<vmem>>, vector<1x16x16xf32>
    %5 = vector.shape_cast %4 : vector<1x16x16xf32> to vector<16x16xf32>
    %cst = arith.constant dense<0.000000e+00> : vector<16x16xf32>
    %6 = tpu.matmul %0, %3, %cst {dimension_numbers = #tpu.dot_dimension_numbers<[1], [0], [0], [1], [0, 0, 1, 1], [], []>} : vector<16x16xf32>, vector<16x16xf32>, vector<16x16xf32> -> vector<16x16xf32>
    %cst_9 = arith.constant dense<0.000000e+00> : vector<16x16xf32>
    %7 = tpu.matmul %6, %1, %cst_9 {dimension_numbers = #tpu.dot_dimension_numbers<[1], [0], [0], [1], [0, 0, 1, 1], [], []>} : vector<16x16xf32>, vector<16x16xf32>, vector<16x16xf32> -> vector<16x16xf32>
    %cst_10 = arith.constant dense<0.000000e+00> : vector<16x16xf32>
    %8 = tpu.matmul %0, %5, %cst_10 {dimension_numbers = #tpu.dot_dimension_numbers<[1], [0], [0], [1], [0, 0, 1, 1], [], []>} : vector<16x16xf32>, vector<16x16xf32>, vector<16x16xf32> -> vector<16x16xf32>
    %cst_11 = arith.constant dense<0.000000e+00> : vector<16x16xf32>
    %9 = tpu.matmul %8, %1, %cst_11 {dimension_numbers = #tpu.dot_dimension_numbers<[1], [0], [0], [1], [0, 0, 1, 1], [], []>} : vector<16x16xf32>, vector<16x16xf32>, vector<16x16xf32> -> vector<16x16xf32>
    %10 = arith.mulf %3, %3 : vector<16x16xf32>
    %cst_12 = arith.constant dense<0.000000e+00> : vector<16x16xf32>
    %11 = tpu.matmul %0, %10, %cst_12 {dimension_numbers = #tpu.dot_dimension_numbers<[1], [0], [0], [1], [0, 0, 1, 1], [], []>} : vector<16x16xf32>, vector<16x16xf32>, vector<16x16xf32> -> vector<16x16xf32>
    %cst_13 = arith.constant dense<0.000000e+00> : vector<16x16xf32>
    %12 = tpu.matmul %11, %1, %cst_13 {dimension_numbers = #tpu.dot_dimension_numbers<[1], [0], [0], [1], [0, 0, 1, 1], [], []>} : vector<16x16xf32>, vector<16x16xf32>, vector<16x16xf32> -> vector<16x16xf32>
    %13 = arith.mulf %5, %5 : vector<16x16xf32>
    %cst_14 = arith.constant dense<0.000000e+00> : vector<16x16xf32>
    %14 = tpu.matmul %0, %13, %cst_14 {dimension_numbers = #tpu.dot_dimension_numbers<[1], [0], [0], [1], [0, 0, 1, 1], [], []>} : vector<16x16xf32>, vector<16x16xf32>, vector<16x16xf32> -> vector<16x16xf32>
    %cst_15 = arith.constant dense<0.000000e+00> : vector<16x16xf32>
    %15 = tpu.matmul %14, %1, %cst_15 {dimension_numbers = #tpu.dot_dimension_numbers<[1], [0], [0], [1], [0, 0, 1, 1], [], []>} : vector<16x16xf32>, vector<16x16xf32>, vector<16x16xf32> -> vector<16x16xf32>
    %16 = arith.mulf %3, %5 : vector<16x16xf32>
    %cst_16 = arith.constant dense<0.000000e+00> : vector<16x16xf32>
    %17 = tpu.matmul %0, %16, %cst_16 {dimension_numbers = #tpu.dot_dimension_numbers<[1], [0], [0], [1], [0, 0, 1, 1], [], []>} : vector<16x16xf32>, vector<16x16xf32>, vector<16x16xf32> -> vector<16x16xf32>
    %cst_17 = arith.constant dense<0.000000e+00> : vector<16x16xf32>
    %18 = tpu.matmul %17, %1, %cst_17 {dimension_numbers = #tpu.dot_dimension_numbers<[1], [0], [0], [1], [0, 0, 1, 1], [], []>} : vector<16x16xf32>, vector<16x16xf32>, vector<16x16xf32> -> vector<16x16xf32>
    %19 = arith.mulf %7, %7 : vector<16x16xf32>
    %20 = arith.mulf %9, %9 : vector<16x16xf32>
    %21 = arith.mulf %7, %9 : vector<16x16xf32>
    %22 = arith.subf %12, %19 : vector<16x16xf32>
    %23 = arith.subf %15, %20 : vector<16x16xf32>
    %24 = arith.subf %18, %21 : vector<16x16xf32>
    %cst_18 = arith.constant 2.000000e+00 : f32
    %25 = vector.broadcast %cst_18 : f32 to vector<16x16xf32>
    %26 = arith.mulf %25, %21 : vector<16x16xf32>
    %cst_19 = arith.constant 9.99999974E-5 : f32
    %27 = vector.broadcast %cst_19 : f32 to vector<16x16xf32>
    %28 = arith.addf %26, %27 : vector<16x16xf32>
    %cst_20 = arith.constant 2.000000e+00 : f32
    %29 = vector.broadcast %cst_20 : f32 to vector<16x16xf32>
    %30 = arith.mulf %29, %24 : vector<16x16xf32>
    %cst_21 = arith.constant 8.99999984E-4 : f32
    %31 = vector.broadcast %cst_21 : f32 to vector<16x16xf32>
    %32 = arith.addf %30, %31 : vector<16x16xf32>
    %33 = arith.mulf %28, %32 : vector<16x16xf32>
    %34 = arith.addf %19, %20 : vector<16x16xf32>
    %cst_22 = arith.constant 9.99999974E-5 : f32
    %35 = vector.broadcast %cst_22 : f32 to vector<16x16xf32>
    %36 = arith.addf %34, %35 : vector<16x16xf32>
    %37 = arith.addf %22, %23 : vector<16x16xf32>
    %cst_23 = arith.constant 8.99999984E-4 : f32
    %38 = vector.broadcast %cst_23 : f32 to vector<16x16xf32>
    %39 = arith.addf %37, %38 : vector<16x16xf32>
    %40 = arith.mulf %36, %39 : vector<16x16xf32>
    %41 = tpu.reciprocal %40 : vector<16x16xf32> -> vector<16x16xf32>
    %42 = arith.mulf %33, %41 : vector<16x16xf32>
    %43 = vector.shape_cast %42 : vector<16x16xf32> to vector<1x16x16xf32>
    %cst_24 = arith.constant dense<0.000000e+00> : vector<1xf32>
    %44 = vector.multi_reduction <add>, %43, %cst_24 [1, 2] : vector<1x16x16xf32> to vector<1xf32>
    %45 = vector.shape_cast %44 : vector<1xf32> to vector<1x1x1xf32>
    %46 = vector.extract %45[0, 0, 0] : f32 from vector<1x1x1xf32>
    %cst_25 = arith.constant 0.000000e+00 : f32
    %47 = arith.addf %cst_25, %46 : f32
    %c1 = arith.constant 1 : index
    %c0_26 = arith.constant 0 : index
    %c0_27 = arith.constant 0 : index
    %48 = vector.load %arg3[%c1, %c0_26, %c0_27] : memref<3x16x16xf32, #tpu.memory_space<vmem>>, vector<1x16x16xf32>
    %49 = vector.shape_cast %48 : vector<1x16x16xf32> to vector<16x16xf32>
    %c1_28 = arith.constant 1 : index
    %c0_29 = arith.constant 0 : index
    %c0_30 = arith.constant 0 : index
    %50 = vector.load %arg4[%c1_28, %c0_29, %c0_30] : memref<3x16x16xf32, #tpu.memory_space<vmem>>, vector<1x16x16xf32>
    %51 = vector.shape_cast %50 : vector<1x16x16xf32> to vector<16x16xf32>
    %cst_31 = arith.constant dense<0.000000e+00> : vector<16x16xf32>
    %52 = tpu.matmul %0, %49, %cst_31 {dimension_numbers = #tpu.dot_dimension_numbers<[1], [0], [0], [1], [0, 0, 1, 1], [], []>} : vector<16x16xf32>, vector<16x16xf32>, vector<16x16xf32> -> vector<16x16xf32>
    %cst_32 = arith.constant dense<0.000000e+00> : vector<16x16xf32>
    %53 = tpu.matmul %52, %1, %cst_32 {dimension_numbers = #tpu.dot_dimension_numbers<[1], [0], [0], [1], [0, 0, 1, 1], [], []>} : vector<16x16xf32>, vector<16x16xf32>, vector<16x16xf32> -> vector<16x16xf32>
    %cst_33 = arith.constant dense<0.000000e+00> : vector<16x16xf32>
    %54 = tpu.matmul %0, %51, %cst_33 {dimension_numbers = #tpu.dot_dimension_numbers<[1], [0], [0], [1], [0, 0, 1, 1], [], []>} : vector<16x16xf32>, vector<16x16xf32>, vector<16x16xf32> -> vector<16x16xf32>
    %cst_34 = arith.constant dense<0.000000e+00> : vector<16x16xf32>
    %55 = tpu.matmul %54, %1, %cst_34 {dimension_numbers = #tpu.dot_dimension_numbers<[1], [0], [0], [1], [0, 0, 1, 1], [], []>} : vector<16x16xf32>, vector<16x16xf32>, vector<16x16xf32> -> vector<16x16xf32>
    %56 = arith.mulf %49, %49 : vector<16x16xf32>
    %cst_35 = arith.constant dense<0.000000e+00> : vector<16x16xf32>
    %57 = tpu.matmul %0, %56, %cst_35 {dimension_numbers = #tpu.dot_dimension_numbers<[1], [0], [0], [1], [0, 0, 1, 1], [], []>} : vector<16x16xf32>, vector<16x16xf32>, vector<16x16xf32> -> vector<16x16xf32>
    %cst_36 = arith.constant dense<0.000000e+00> : vector<16x16xf32>
    %58 = tpu.matmul %57, %1, %cst_36 {dimension_numbers = #tpu.dot_dimension_numbers<[1], [0], [0], [1], [0, 0, 1, 1], [], []>} : vector<16x16xf32>, vector<16x16xf32>, vector<16x16xf32> -> vector<16x16xf32>
    %59 = arith.mulf %51, %51 : vector<16x16xf32>
    %cst_37 = arith.constant dense<0.000000e+00> : vector<16x16xf32>
    %60 = tpu.matmul %0, %59, %cst_37 {dimension_numbers = #tpu.dot_dimension_numbers<[1], [0], [0], [1], [0, 0, 1, 1], [], []>} : vector<16x16xf32>, vector<16x16xf32>, vector<16x16xf32> -> vector<16x16xf32>
    %cst_38 = arith.constant dense<0.000000e+00> : vector<16x16xf32>
    %61 = tpu.matmul %60, %1, %cst_38 {dimension_numbers = #tpu.dot_dimension_numbers<[1], [0], [0], [1], [0, 0, 1, 1], [], []>} : vector<16x16xf32>, vector<16x16xf32>, vector<16x16xf32> -> vector<16x16xf32>
    %62 = arith.mulf %49, %51 : vector<16x16xf32>
    %cst_39 = arith.constant dense<0.000000e+00> : vector<16x16xf32>
    %63 = tpu.matmul %0, %62, %cst_39 {dimension_numbers = #tpu.dot_dimension_numbers<[1], [0], [0], [1], [0, 0, 1, 1], [], []>} : vector<16x16xf32>, vector<16x16xf32>, vector<16x16xf32> -> vector<16x16xf32>
    %cst_40 = arith.constant dense<0.000000e+00> : vector<16x16xf32>
    %64 = tpu.matmul %63, %1, %cst_40 {dimension_numbers = #tpu.dot_dimension_numbers<[1], [0], [0], [1], [0, 0, 1, 1], [], []>} : vector<16x16xf32>, vector<16x16xf32>, vector<16x16xf32> -> vector<16x16xf32>
    %65 = arith.mulf %53, %53 : vector<16x16xf32>
    %66 = arith.mulf %55, %55 : vector<16x16xf32>
    %67 = arith.mulf %53, %55 : vector<16x16xf32>
    %68 = arith.subf %58, %65 : vector<16x16xf32>
    %69 = arith.subf %61, %66 : vector<16x16xf32>
    %70 = arith.subf %64, %67 : vector<16x16xf32>
    %cst_41 = arith.constant 2.000000e+00 : f32
    %71 = vector.broadcast %cst_41 : f32 to vector<16x16xf32>
    %72 = arith.mulf %71, %67 : vector<16x16xf32>
    %cst_42 = arith.constant 9.99999974E-5 : f32
    %73 = vector.broadcast %cst_42 : f32 to vector<16x16xf32>
    %74 = arith.addf %72, %73 : vector<16x16xf32>
    %cst_43 = arith.constant 2.000000e+00 : f32
    %75 = vector.broadcast %cst_43 : f32 to vector<16x16xf32>
    %76 = arith.mulf %75, %70 : vector<16x16xf32>
    %cst_44 = arith.constant 8.99999984E-4 : f32
    %77 = vector.broadcast %cst_44 : f32 to vector<16x16xf32>
    %78 = arith.addf %76, %77 : vector<16x16xf32>
    %79 = arith.mulf %74, %78 : vector<16x16xf32>
    %80 = arith.addf %65, %66 : vector<16x16xf32>
    %cst_45 = arith.constant 9.99999974E-5 : f32
    %81 = vector.broadcast %cst_45 : f32 to vector<16x16xf32>
    %82 = arith.addf %80, %81 : vector<16x16xf32>
    %83 = arith.addf %68, %69 : vector<16x16xf32>
    %cst_46 = arith.constant 8.99999984E-4 : f32
    %84 = vector.broadcast %cst_46 : f32 to vector<16x16xf32>
    %85 = arith.addf %83, %84 : vector<16x16xf32>
    %86 = arith.mulf %82, %85 : vector<16x16xf32>
    %87 = tpu.reciprocal %86 : vector<16x16xf32> -> vector<16x16xf32>
    %88 = arith.mulf %79, %87 : vector<16x16xf32>
    %89 = vector.shape_cast %88 : vector<16x16xf32> to vector<1x16x16xf32>
    %cst_47 = arith.constant dense<0.000000e+00> : vector<1xf32>
    %90 = vector.multi_reduction <add>, %89, %cst_47 [1, 2] : vector<1x16x16xf32> to vector<1xf32>
    %91 = vector.shape_cast %90 : vector<1xf32> to vector<1x1x1xf32>
    %92 = vector.extract %91[0, 0, 0] : f32 from vector<1x1x1xf32>
    %93 = arith.addf %47, %92 : f32
    %c2 = arith.constant 2 : index
    %c0_48 = arith.constant 0 : index
    %c0_49 = arith.constant 0 : index
    %94 = vector.load %arg3[%c2, %c0_48, %c0_49] : memref<3x16x16xf32, #tpu.memory_space<vmem>>, vector<1x16x16xf32>
    %95 = vector.shape_cast %94 : vector<1x16x16xf32> to vector<16x16xf32>
    %c2_50 = arith.constant 2 : index
    %c0_51 = arith.constant 0 : index
    %c0_52 = arith.constant 0 : index
    %96 = vector.load %arg4[%c2_50, %c0_51, %c0_52] : memref<3x16x16xf32, #tpu.memory_space<vmem>>, vector<1x16x16xf32>
    %97 = vector.shape_cast %96 : vector<1x16x16xf32> to vector<16x16xf32>
    %cst_53 = arith.constant dense<0.000000e+00> : vector<16x16xf32>
    %98 = tpu.matmul %0, %95, %cst_53 {dimension_numbers = #tpu.dot_dimension_numbers<[1], [0], [0], [1], [0, 0, 1, 1], [], []>} : vector<16x16xf32>, vector<16x16xf32>, vector<16x16xf32> -> vector<16x16xf32>
    %cst_54 = arith.constant dense<0.000000e+00> : vector<16x16xf32>
    %99 = tpu.matmul %98, %1, %cst_54 {dimension_numbers = #tpu.dot_dimension_numbers<[1], [0], [0], [1], [0, 0, 1, 1], [], []>} : vector<16x16xf32>, vector<16x16xf32>, vector<16x16xf32> -> vector<16x16xf32>
    %cst_55 = arith.constant dense<0.000000e+00> : vector<16x16xf32>
    %100 = tpu.matmul %0, %97, %cst_55 {dimension_numbers = #tpu.dot_dimension_numbers<[1], [0], [0], [1], [0, 0, 1, 1], [], []>} : vector<16x16xf32>, vector<16x16xf32>, vector<16x16xf32> -> vector<16x16xf32>
    %cst_56 = arith.constant dense<0.000000e+00> : vector<16x16xf32>
    %101 = tpu.matmul %100, %1, %cst_56 {dimension_numbers = #tpu.dot_dimension_numbers<[1], [0], [0], [1], [0, 0, 1, 1], [], []>} : vector<16x16xf32>, vector<16x16xf32>, vector<16x16xf32> -> vector<16x16xf32>
    %102 = arith.mulf %95, %95 : vector<16x16xf32>
    %cst_57 = arith.constant dense<0.000000e+00> : vector<16x16xf32>
    %103 = tpu.matmul %0, %102, %cst_57 {dimension_numbers = #tpu.dot_dimension_numbers<[1], [0], [0], [1], [0, 0, 1, 1], [], []>} : vector<16x16xf32>, vector<16x16xf32>, vector<16x16xf32> -> vector<16x16xf32>
    %cst_58 = arith.constant dense<0.000000e+00> : vector<16x16xf32>
    %104 = tpu.matmul %103, %1, %cst_58 {dimension_numbers = #tpu.dot_dimension_numbers<[1], [0], [0], [1], [0, 0, 1, 1], [], []>} : vector<16x16xf32>, vector<16x16xf32>, vector<16x16xf32> -> vector<16x16xf32>
    %105 = arith.mulf %97, %97 : vector<16x16xf32>
    %cst_59 = arith.constant dense<0.000000e+00> : vector<16x16xf32>
    %106 = tpu.matmul %0, %105, %cst_59 {dimension_numbers = #tpu.dot_dimension_numbers<[1], [0], [0], [1], [0, 0, 1, 1], [], []>} : vector<16x16xf32>, vector<16x16xf32>, vector<16x16xf32> -> vector<16x16xf32>
    %cst_60 = arith.constant dense<0.000000e+00> : vector<16x16xf32>
    %107 = tpu.matmul %106, %1, %cst_60 {dimension_numbers = #tpu.dot_dimension_numbers<[1], [0], [0], [1], [0, 0, 1, 1], [], []>} : vector<16x16xf32>, vector<16x16xf32>, vector<16x16xf32> -> vector<16x16xf32>
    %108 = arith.mulf %95, %97 : vector<16x16xf32>
    %cst_61 = arith.constant dense<0.000000e+00> : vector<16x16xf32>
    %109 = tpu.matmul %0, %108, %cst_61 {dimension_numbers = #tpu.dot_dimension_numbers<[1], [0], [0], [1], [0, 0, 1, 1], [], []>} : vector<16x16xf32>, vector<16x16xf32>, vector<16x16xf32> -> vector<16x16xf32>
    %cst_62 = arith.constant dense<0.000000e+00> : vector<16x16xf32>
    %110 = tpu.matmul %109, %1, %cst_62 {dimension_numbers = #tpu.dot_dimension_numbers<[1], [0], [0], [1], [0, 0, 1, 1], [], []>} : vector<16x16xf32>, vector<16x16xf32>, vector<16x16xf32> -> vector<16x16xf32>
    %111 = arith.mulf %99, %99 : vector<16x16xf32>
    %112 = arith.mulf %101, %101 : vector<16x16xf32>
    %113 = arith.mulf %99, %101 : vector<16x16xf32>
    %114 = arith.subf %104, %111 : vector<16x16xf32>
    %115 = arith.subf %107, %112 : vector<16x16xf32>
    %116 = arith.subf %110, %113 : vector<16x16xf32>
    %cst_63 = arith.constant 2.000000e+00 : f32
    %117 = vector.broadcast %cst_63 : f32 to vector<16x16xf32>
    %118 = arith.mulf %117, %113 : vector<16x16xf32>
    %cst_64 = arith.constant 9.99999974E-5 : f32
    %119 = vector.broadcast %cst_64 : f32 to vector<16x16xf32>
    %120 = arith.addf %118, %119 : vector<16x16xf32>
    %cst_65 = arith.constant 2.000000e+00 : f32
    %121 = vector.broadcast %cst_65 : f32 to vector<16x16xf32>
    %122 = arith.mulf %121, %116 : vector<16x16xf32>
    %cst_66 = arith.constant 8.99999984E-4 : f32
    %123 = vector.broadcast %cst_66 : f32 to vector<16x16xf32>
    %124 = arith.addf %122, %123 : vector<16x16xf32>
    %125 = arith.mulf %120, %124 : vector<16x16xf32>
    %126 = arith.addf %111, %112 : vector<16x16xf32>
    %cst_67 = arith.constant 9.99999974E-5 : f32
    %127 = vector.broadcast %cst_67 : f32 to vector<16x16xf32>
    %128 = arith.addf %126, %127 : vector<16x16xf32>
    %129 = arith.addf %114, %115 : vector<16x16xf32>
    %cst_68 = arith.constant 8.99999984E-4 : f32
    %130 = vector.broadcast %cst_68 : f32 to vector<16x16xf32>
    %131 = arith.addf %129, %130 : vector<16x16xf32>
    %132 = arith.mulf %128, %131 : vector<16x16xf32>
    %133 = tpu.reciprocal %132 : vector<16x16xf32> -> vector<16x16xf32>
    %134 = arith.mulf %125, %133 : vector<16x16xf32>
    %135 = vector.shape_cast %134 : vector<16x16xf32> to vector<1x16x16xf32>
    %cst_69 = arith.constant dense<0.000000e+00> : vector<1xf32>
    %136 = vector.multi_reduction <add>, %135, %cst_69 [1, 2] : vector<1x16x16xf32> to vector<1xf32>
    %137 = vector.shape_cast %136 : vector<1xf32> to vector<1x1x1xf32>
    %138 = vector.extract %137[0, 0, 0] : f32 from vector<1x1x1xf32>
    %139 = arith.addf %93, %138 : f32
    %cst_70 = arith.constant 0.000000e+00 : f32
    %140 = vector.broadcast %cst_70 : f32 to vector<1x1x128xf32>
    %141 = vector.broadcast %139 : f32 to vector<1x1x128xf32>
    %142 = arith.addf %140, %141 : vector<1x1x128xf32>
    %c0_71 = arith.constant 0 : index
    %c0_72 = arith.constant 0 : index
    %c0_73 = arith.constant 0 : index
    %143 = vector.load %arg5[%c0_71, %c0_72, %c0_73] : memref<1x1x128xf32, #tpu.memory_space<vmem>>, vector<1x1x128xf32>
    tpu.vector_store %arg5[%c0_71, %c0_72, %c0_73], %142 {strides = array<i32>} : memref<1x1x128xf32, #tpu.memory_space<vmem>>, vector<1x1x128xf32>,
    return
  }
  func.func @transform_0(%arg0: i32) -> (i32, i32) {
    %c0_i32 = arith.constant 0 : i32
    %c0_i32_0 = arith.constant 0 : i32
    %c0_i32_1 = arith.constant 0 : i32
    return %c0_i32, %c0_i32_0 : i32, i32
  }
  func.func @transform_1(%arg0: i32) -> (i32, i32) {
    %c0_i32 = arith.constant 0 : i32
    %c0_i32_0 = arith.constant 0 : i32
    %c0_i32_1 = arith.constant 0 : i32
    return %c0_i32, %c0_i32_0 : i32, i32
  }
  func.func @transform_2(%arg0: i32) -> (i32, i32, i32) {
    %c0_i32 = arith.constant 0 : i32
    %c0_i32_0 = arith.constant 0 : i32
    %c0_i32_1 = arith.constant 0 : i32
    return %arg0, %c0_i32, %c0_i32_0 : i32, i32, i32
  }
  func.func @transform_3(%arg0: i32) -> (i32, i32, i32) {
    %c0_i32 = arith.constant 0 : i32
    %c0_i32_0 = arith.constant 0 : i32
    %c0_i32_1 = arith.constant 0 : i32
    return %arg0, %c0_i32, %c0_i32_0 : i32, i32, i32
  }
  func.func @transform_4(%arg0: i32) -> (i32, i32, i32) {
    %c0_i32 = arith.constant 0 : i32
    %c0_i32_0 = arith.constant 0 : i32
    %c0_i32_1 = arith.constant 0 : i32
    return %arg0, %c0_i32, %c0_i32_0 : i32, i32, i32
  }
}

</mosaic_0001>

<llo_original>
// kernel: tpu_custom_call.1
$region0: #{tpu_custom_call.1}
  #allocation0 [shape = 'u32[]', space=smem, size = 0x4, offset = 0x4, fixed_abs, tag = 'smem constant byte address 0x4 - core index']
  #allocation1 [shape = 'u32[72,128]{1,0:T(1,128)}', space=vmem, size = 0x9000, scoped, tag = 'internal scratch']
  %s0 = inlined_call_operand.hbm [shape: f32[16,16], index: 0, kind: input, shape index: {}]
  %s1 = inlined_call_operand.hbm [shape: f32[16,16], index: 1, kind: input, shape index: {}]
  %s2 = inlined_call_operand.hbm [shape: f32[6,16,16], index: 2, kind: input, shape index: {}]
  %s3 = inlined_call_operand.hbm [shape: f32[6,16,16], index: 3, kind: input, shape index: {}]
  %s4 = inlined_call_operand.hbm [shape: f32[2,1,128], index: 4, kind: output, shape index: {}]
  %s5 = sld [smem:[#allocation0]]
  $region65: #{tpu_custom_call.1} parent=0
    _
  %s7 = ssub.s32 1, %s5
  %s8 = scalar_select 0, %s7, %s5
  $region1: #{tpu_custom_call.1} parent=0
    #allocation2 [shape = 'u8[8192]{0}', space=vmem, size = 0x2000, scoped, tag = 'input window, operand 0, single buffered']
    #allocation3 [shape = 's32[2]{0}', space=sflag, size = 0x8, scoped, tag = 'scoped memory for tpu_custom_call.1']
    #allocation4 [shape = 's32[2]{0}', space=sflag, size = 0x8, scoped, tag = 'scoped memory for tpu_custom_call.1']
    #allocation5 [shape = 'u8[8192]{0}', space=vmem, size = 0x2000, scoped, tag = 'input window, operand 1, single buffered']
    #allocation6 [shape = 's32[1]{0}', space=sflag, size = 0x4, scoped, tag = 'scoped memory for tpu_custom_call.1']
    #allocation7 [shape = 'u8[49152]{0}', space=vmem, size = 0xc000, scoped, tag = 'input window, operand 2']
    #allocation8 [shape = 'u8[49152]{0}', space=vmem, size = 0xc000, scoped, tag = 'input window, operand 3']
    #allocation9 [shape = 'u8[1024]{0}', space=vmem, size = 0x400, scoped, tag = 'output window, operand 0']
    %9 = vsyncpa [#allocation3], 0
    %10 = vsyncpa [#allocation6], 0
    %11 = vsyncpa [#allocation4], 0
    %s12 = scalar_lea.sflag [#allocation4], 1
    %13 = vsyncpa %s12, 0
    loop: start=0, step=1, limit=4
    $region2: #{tpu_custom_call.1} parent=1 // loop_pre_header
      _
    $region3: #{tpu_custom_call.1} parent=1 // loop_header
      %s15 = sphi 0, %s19
      %p16 = scmp.ge.s32.totalorder %s15, 4
      %s23 = sphi 0, %s23
      %s25 = sphi 0, %s23
      %s26 = sphi 0, %s25
      %s40 = sphi 0, %s26
      %s44 = sphi 0, %s44
      %s46 = sphi 0, %s44
      %s47 = sphi 0, %s46
      %s61 = sphi 0, %s47
      %s67 = sphi 0, %s69
      %s70 = sphi 0, %s67
      %s71 = sphi 0, %s70
      %s87 = sphi 0, %s71
      %s93 = sphi 0, %s95
      %s96 = sphi 0, %s93
      %s97 = sphi 0, %s96
      %s113 = sphi 0, %s97
      %s119 = sphi 0, %s121
      %s122 = sphi 0, %s119
      %s123 = sphi 0, %s122
      %s139 = sphi 0, %s123
    $region4: #{tpu_custom_call.1} parent=1 // loop_header_branch
      %18 = sbr.rel (%p16) target = $region8
    $region5: #{tpu_custom_call.1} parent=1 // loop_body
      %s20 = ssub.s32 %s15, 1
      %s21 = ssub.s32 %s15, 2
      %s22 = sadd.s32 %s15, 1
      %s24 = sadd.s32 %s23, 1
      %p27 = scmp.eq.s32.totalorder %s15, 1
      %p28 = scmp.ne.s32.totalorder %s23, %s25
      %p29 = scmp.eq.s32.totalorder %s15, 0
      %p30 = por %p28, %p29
      %p31 = scmp.ne.s32.totalorder %s23, %s25
      %p32 = scmp.eq.s32.totalorder %s20, 1
      %p33 = por %p31, %p32
      %p34 = scmp.ne.s32.totalorder %s25, %s26
      %p35 = scmp.eq.s32.totalorder %s20, 0
      %p36 = por %p34, %p35
      %p37 = scmp.ne.s32.totalorder %s25, %s26
      %p38 = scmp.eq.s32.totalorder %s21, 1
      %p39 = por %p37, %p38
      %p41 = scmp.ne.s32.totalorder %s26, %s40
      %p42 = scmp.eq.s32.totalorder %s21, 0
      %p43 = por %p41, %p42
      %s45 = sadd.s32 %s44, 1
      %p48 = scmp.eq.s32.totalorder %s15, 1
      %p49 = scmp.ne.s32.totalorder %s44, %s46
      %p50 = scmp.eq.s32.totalorder %s15, 0
      %p51 = por %p49, %p50
      %p52 = scmp.ne.s32.totalorder %s44, %s46
      %p53 = scmp.eq.s32.totalorder %s20, 1
      %p54 = por %p52, %p53
      %p55 = scmp.ne.s32.totalorder %s46, %s47
      %p56 = scmp.eq.s32.totalorder %s20, 0
      %p57 = por %p55, %p56
      %p58 = scmp.ne.s32.totalorder %s46, %s47
      %p59 = scmp.eq.s32.totalorder %s21, 1
      %p60 = por %p58, %p59
      %p62 = scmp.ne.s32.totalorder %s47, %s61
      %p63 = scmp.eq.s32.totalorder %s21, 0
      %p64 = por %p62, %p63
      %s65 = ssub.s32 %s15, %s22
      %p66 = scmp.eq.s32.totalorder %s65, 0
      %s68 = sadd.s32 %s67, 1
      %s69 = scalar_select %p66, %s67, %s68
      %p72 = pneg %p66
      %p73 = scmp.eq.s32.totalorder %s15, 1
      %p74 = por %p72, %p73
      %p75 = scmp.ne.s32.totalorder %s67, %s70
      %p76 = scmp.eq.s32.totalorder %s15, 0
      %p77 = por %p75, %p76
      %p78 = scmp.ne.s32.totalorder %s67, %s70
      %p79 = scmp.eq.s32.totalorder %s20, 1
      %p80 = por %p78, %p79
      %p81 = scmp.ne.s32.totalorder %s70, %s71
      %p82 = scmp.eq.s32.totalorder %s20, 0
      %p83 = por %p81, %p82
      %p84 = scmp.ne.s32.totalorder %s70, %s71
      %p85 = scmp.eq.s32.totalorder %s21, 1
      %p86 = por %p84, %p85
      %p88 = scmp.ne.s32.totalorder %s71, %s87
      %p89 = scmp.eq.s32.totalorder %s21, 0
      %p90 = por %p88, %p89
      %s91 = ssub.s32 %s15, %s22
      %p92 = scmp.eq.s32.totalorder %s91, 0
      %s94 = sadd.s32 %s93, 1
      %s95 = scalar_select %p92, %s93, %s94
      %p98 = pneg %p92
      %p99 = scmp.eq.s32.totalorder %s15, 1
      %p100 = por %p98, %p99
      %p101 = scmp.ne.s32.totalorder %s93, %s96
      %p102 = scmp.eq.s32.totalorder %s15, 0
      %p103 = por %p101, %p102
      %p104 = scmp.ne.s32.totalorder %s93, %s96
      %p105 = scmp.eq.s32.totalorder %s20, 1
      %p106 = por %p104, %p105
      %p107 = scmp.ne.s32.totalorder %s96, %s97
      %p108 = scmp.eq.s32.totalorder %s20, 0
      %p109 = por %p107, %p108
      %p110 = scmp.ne.s32.totalorder %s96, %s97
      %p111 = scmp.eq.s32.totalorder %s21, 1
      %p112 = por %p110, %p111
      %p114 = scmp.ne.s32.totalorder %s97, %s113
      %p115 = scmp.eq.s32.totalorder %s21, 0
      %p116 = por %p114, %p115
      %s117 = ssub.s32 %s15, %s22
      %p118 = scmp.eq.s32.totalorder %s117, 0
      %s120 = sadd.s32 %s119, 1
      %s121 = scalar_select %p118, %s119, %s120
      %p124 = pneg %p118
      %p125 = scmp.eq.s32.totalorder %s15, 1
      %p126 = por %p124, %p125
      %p127 = scmp.ne.s32.totalorder %s119, %s122
      %p128 = scmp.eq.s32.totalorder %s15, 0
      %p129 = por %p127, %p128
      %p130 = scmp.ne.s32.totalorder %s119, %s122
      %p131 = scmp.eq.s32.totalorder %s20, 1
      %p132 = por %p130, %p131
      %p133 = scmp.ne.s32.totalorder %s122, %s123
      %p134 = scmp.eq.s32.totalorder %s20, 0
      %p135 = por %p133, %p134
      %p136 = scmp.ne.s32.totalorder %s122, %s123
      %p137 = scmp.eq.s32.totalorder %s21, 1
      %p138 = por %p136, %p137
      %p140 = scmp.ne.s32.totalorder %s123, %s139
      %p141 = scmp.eq.s32.totalorder %s21, 0
      %p142 = por %p140, %p141
      %p143 = scmp.le.s32.totalorder 1, %s15
      %p144 = scmp.lt.s32.totalorder %s15, 3
      %p145 = pnand %p143, %p144
      %p146 = pneg %p145
      // Predicated region
      $region9: #{tpu_custom_call.1} parent=5 // pred_check
        _
      $region10: #{tpu_custom_call.1} parent=5 // pred_check_branch
        %148 = sbr.rel (%p145) target = $region12
      $region11: #{tpu_custom_call.1} parent=5 // pred_region
        %s149 = ssub.s32 %s15, 1
        // Predicated region
        $region13: #{tpu_custom_call.1} parent=11 // pred_check
          %p150 = pneg %p36
        $region14: #{tpu_custom_call.1} parent=11 // pred_check_branch
          %152 = sbr.rel (%p150) target = $region16
        $region15: #{tpu_custom_call.1} parent=11 // pred_region
          %154 = vsyncadd [#allocation3], 0
          %s155 = sshll.u32 %s0, 4
          %s156 = int_to_ptr.hbm [resolvable:$true] %s155
          %s157 = sshll.u32 [#allocation2], 4
          %s158 = int_to_ptr.vmem [resolvable:$true] %s157
          %163 = dma.hbm_to_vmem [thread:$0]  %s156, 256, %s158, [#allocation3], 128, 128, 8
        $region16: #{tpu_custom_call.1} parent=11 // pred_fallthru
          _
        // Predicated region
        $region17: #{tpu_custom_call.1} parent=11 // pred_check
          %p164 = pneg %p57
        $region18: #{tpu_custom_call.1} parent=11 // pred_check_branch
          %166 = sbr.rel (%p164) target = $region20
        $region19: #{tpu_custom_call.1} parent=11 // pred_region
          %168 = vsyncadd [#allocation6], 0
          %s169 = sshll.u32 %s1, 4
          %s170 = int_to_ptr.hbm [resolvable:$true] %s169
          %s171 = sshll.u32 [#allocation5], 4
          %s172 = int_to_ptr.vmem [resolvable:$true] %s171
          %177 = dma.hbm_to_vmem [thread:$0]  %s170, 256, %s172, [#allocation6], 128, 128, 8
        $region20: #{tpu_custom_call.1} parent=11 // pred_fallthru
          _
      $region12: #{tpu_custom_call.1} parent=5 // pred_fallthru
        _
      %p178 = scmp.lt.s32.totalorder %s15, 2
      // Predicated region
      $region21: #{tpu_custom_call.1} parent=5 // pred_check
        %p179 = pneg %p178
      $region22: #{tpu_custom_call.1} parent=5 // pred_check_branch
        %181 = sbr.rel (%p179) target = $region24
      $region23: #{tpu_custom_call.1} parent=5 // pred_region
        // Predicated region
        $region25: #{tpu_custom_call.1} parent=23 // pred_check
          %p182 = pneg %p77
        $region26: #{tpu_custom_call.1} parent=23 // pred_check_branch
          %184 = sbr.rel (%p182) target = $region28
        $region27: #{tpu_custom_call.1} parent=23 // pred_region
          %s185 = sand.u32 %s15, 1
          %s186 = scalar_lea.sflag [#allocation3], %s185
          %s187 = sand.u32 %s67, 1
          %s188 = smul.addr %s187, 48
          %s189 = scalar_lea.vmem [#allocation7], %s188
          %s190 = smul.u32 3, %s15
          %192 = vsyncadd %s186, 0
          %s193 = smul.addr %s190, 2
          %s194 = smul.addr %s193, 8
          %s195 = scalar_lea.hbm %s2, %s194
          %s196 = sshll.u32 %s195, 4
          %s197 = int_to_ptr.hbm [resolvable:$true] %s196
          %s198 = sshll.u32 %s189, 4
          %s199 = int_to_ptr.vmem [resolvable:$true] %s198
          %204 = dma.hbm_to_vmem [thread:$0]  %s197, 768, %s199, %s186, 128, 128, 8
        $region28: #{tpu_custom_call.1} parent=23 // pred_fallthru
          _
        // Predicated region
        $region29: #{tpu_custom_call.1} parent=23 // pred_check
          %p205 = pneg %p103
        $region30: #{tpu_custom_call.1} parent=23 // pred_check_branch
          %207 = sbr.rel (%p205) target = $region32
        $region31: #{tpu_custom_call.1} parent=23 // pred_region
          %s208 = sand.u32 %s15, 1
          %s209 = scalar_lea.sflag [#allocation3], %s208
          %s210 = sand.u32 %s93, 1
          %s211 = smul.addr %s210, 48
          %s212 = scalar_lea.vmem [#allocation8], %s211
          %s213 = smul.u32 3, %s15
          %215 = vsyncadd %s209, 0
          %s216 = smul.addr %s213, 2
          %s217 = smul.addr %s216, 8
          %s218 = scalar_lea.hbm %s3, %s217
          %s219 = sshll.u32 %s218, 4
          %s220 = int_to_ptr.hbm [resolvable:$true] %s219
          %s221 = sshll.u32 %s212, 4
          %s222 = int_to_ptr.vmem [resolvable:$true] %s221
          %227 = dma.hbm_to_vmem [thread:$0]  %s220, 768, %s222, %s209, 128, 128, 8
        $region32: #{tpu_custom_call.1} parent=23 // pred_fallthru
          _
      $region24: #{tpu_custom_call.1} parent=5 // pred_fallthru
        _
      %p228 = scmp.le.s32.totalorder 1, %s15
      %p229 = scmp.lt.s32.totalorder %s15, 3
      %p230 = pnand %p228, %p229
      %p231 = pneg %p230
      // Predicated region
      $region33: #{tpu_custom_call.1} parent=5 // pred_check
        _
      $region34: #{tpu_custom_call.1} parent=5 // pred_check_branch
        %233 = sbr.rel (%p230) target = $region36
      $region35: #{tpu_custom_call.1} parent=5 // pred_region
        %s234 = ssub.s32 %s15, 1
        // Predicated region
        $region37: #{tpu_custom_call.1} parent=35 // pred_check
          %p235 = pneg %p36
        $region38: #{tpu_custom_call.1} parent=35 // pred_check_branch
          %237 = sbr.rel (%p235) target = $region40
        $region39: #{tpu_custom_call.1} parent=35 // pred_region
          %239 = dma.done [#allocation3], 256
        $region40: #{tpu_custom_call.1} parent=35 // pred_fallthru
          _
        // Predicated region
        $region41: #{tpu_custom_call.1} parent=35 // pred_check
          %p240 = pneg %p57
        $region42: #{tpu_custom_call.1} parent=35 // pred_check_branch
          %242 = sbr.rel (%p240) target = $region44
        $region43: #{tpu_custom_call.1} parent=35 // pred_region
          %244 = dma.done [#allocation6], 256
        $region44: #{tpu_custom_call.1} parent=35 // pred_fallthru
          _
        %s245 = sand.u32 %s20, 1
        %s246 = scalar_lea.sflag [#allocation3], %s245
        %s247 = sand.u32 %s70, 1
        %s248 = smul.addr %s247, 48
        %s249 = scalar_lea.vmem [#allocation7], %s248
        // Predicated region
        $region45: #{tpu_custom_call.1} parent=35 // pred_check
          %p250 = pneg %p83
        $region46: #{tpu_custom_call.1} parent=35 // pred_check_branch
          %252 = sbr.rel (%p250) target = $region48
        $region47: #{tpu_custom_call.1} parent=35 // pred_region
          %254 = dma.done %s246, 768
        $region48: #{tpu_custom_call.1} parent=35 // pred_fallthru
          _
        %s255 = sand.u32 %s20, 1
        %s256 = scalar_lea.sflag [#allocation3], %s255
        %s257 = sand.u32 %s96, 1
        %s258 = smul.addr %s257, 48
        %s259 = scalar_lea.vmem [#allocation8], %s258
        // Predicated region
        $region49: #{tpu_custom_call.1} parent=35 // pred_check
          %p260 = pneg %p109
        $region50: #{tpu_custom_call.1} parent=35 // pred_check_branch
          %262 = sbr.rel (%p260) target = $region52
        $region51: #{tpu_custom_call.1} parent=35 // pred_region
          %264 = dma.done %s256, 768
        $region52: #{tpu_custom_call.1} parent=35 // pred_fallthru
          _
        %p265 = pneg %p36
        %p266 = pneg %p33
        %p267 = pneg %p57
        %p268 = pneg %p54
        %s269 = sand.u32 %s20, 1
        %s270 = scalar_lea.sflag [#allocation3], %s269
        %s271 = sand.u32 %s70, 1
        %s272 = smul.addr %s271, 48
        %s273 = scalar_lea.vmem [#allocation7], %s272
        %p274 = pneg %p83
        %p275 = pneg %p80
        %s276 = sand.u32 %s20, 1
        %s277 = scalar_lea.sflag [#allocation3], %s276
        %s278 = sand.u32 %s96, 1
        %s279 = smul.addr %s278, 48
        %s280 = scalar_lea.vmem [#allocation8], %s279
        %p281 = pneg %p109
        %p282 = pneg %p106
        %p283 = pneg %p135
        %p284 = pneg %p132
        %s285 = sand.u32 %s122, 1
        %s286 = scalar_lea.sflag [#allocation4], %s285
        %s287 = sand.u32 %s122, 1
        %s288 = scalar_lea.vmem [#allocation9], %s287
        %s289 = smul.u32 3, %s20
        %s290 = smul.u32 3, %s20
        %v291 = vld [vmem:[#allocation2] sm:$0xff]
        %v292 = vld [vmem:[#allocation2 + $0x8] sm:$0xff]
        %v293 = vld [vmem:[#allocation5] sm:$0xff]
        %v294 = vld [vmem:[#allocation5 + $0x8] sm:$0xff]
        %v295 = vld [vmem:[%s249] sm:$0xff]
        %v296 = vld [vmem:[%s249 + $0x8] sm:$0xff]
        %v297 = vld [vmem:[%s249 + $0x10] sm:$0xff]
        %v298 = vld [vmem:[%s249 + $0x18] sm:$0xff]
        %v299 = vld [vmem:[%s249 + $0x20] sm:$0xff]
        %v300 = vld [vmem:[%s249 + $0x28] sm:$0xff]
        %v301 = vld [vmem:[%s259] sm:$0xff]
        %v302 = vld [vmem:[%s259 + $0x8] sm:$0xff]
        %v303 = vld [vmem:[%s259 + $0x10] sm:$0xff]
        %v304 = vld [vmem:[%s259 + $0x18] sm:$0xff]
        %v305 = vld [vmem:[%s259 + $0x20] sm:$0xff]
        %v306 = vld [vmem:[%s259 + $0x28] sm:$0xff]
        %v307 = vmul.f32 %v295, %v295
        %v308 = vmul.f32 %v296, %v296
        %v309 = vmul.f32 %v297, %v297
        %v310 = vmul.f32 %v298, %v298
        %v311 = vmul.f32 %v299, %v299
        %v312 = vmul.f32 %v300, %v300
        %v313 = vmul.f32 %v301, %v301
        %v314 = vmul.f32 %v302, %v302
        %v315 = vmul.f32 %v303, %v303
        %v316 = vmul.f32 %v304, %v304
        %v317 = vmul.f32 %v305, %v305
        %v318 = vmul.f32 %v306, %v306
        %v319 = vmul.f32 %v295, %v301
        %v320 = vmul.f32 %v296, %v302
        %v321 = vmul.f32 %v297, %v303
        %v322 = vmul.f32 %v298, %v304
        %v323 = vmul.f32 %v299, %v305
        %v324 = vmul.f32 %v300, %v306
        %327 = vrot.lane.b32.xlu0 %v297, 16
        %v328 = vpop.permute.xlu0 %327
        %329 = vrot.lane.b32.xlu0 %v298, 16
        %v330 = vpop.permute.xlu0 %329
        %335 = vrot.lane.b32.xlu0 %v299, 32
        %v336 = vpop.permute.xlu0 %335
        %337 = vrot.lane.b32.xlu0 %v300, 32
        %v338 = vpop.permute.xlu0 %337
        %343 = vrot.lane.b32.xlu0 %v301, 48
        %v344 = vpop.permute.xlu0 %343
        %345 = vrot.lane.b32.xlu0 %v302, 48
        %v346 = vpop.permute.xlu0 %345
        %351 = vrot.lane.b32.xlu0 %v303, 64
        %v352 = vpop.permute.xlu0 %351
        %353 = vrot.lane.b32.xlu0 %v304, 64
        %v354 = vpop.permute.xlu0 %353
        %359 = vrot.lane.b32.xlu0 %v305, 80
        %v360 = vpop.permute.xlu0 %359
        %361 = vrot.lane.b32.xlu0 %v306, 80
        %v362 = vpop.permute.xlu0 %361
        %367 = vrot.lane.b32.xlu0 %v307, 96
        %v368 = vpop.permute.xlu0 %367
        %369 = vrot.lane.b32.xlu0 %v308, 96
        %v370 = vpop.permute.xlu0 %369
        %375 = vrot.lane.b32.xlu0 %v309, 112
        %v376 = vpop.permute.xlu0 %375
        %377 = vrot.lane.b32.xlu0 %v310, 112
        %v378 = vpop.permute.xlu0 %377
        %383 = vrot.lane.b32.xlu0 %v313, 16
        %v384 = vpop.permute.xlu0 %383
        %385 = vrot.lane.b32.xlu0 %v314, 16
        %v386 = vpop.permute.xlu0 %385
        %391 = vrot.lane.b32.xlu0 %v315, 32
        %v392 = vpop.permute.xlu0 %391
        %393 = vrot.lane.b32.xlu0 %v316, 32
        %v394 = vpop.permute.xlu0 %393
        %399 = vrot.lane.b32.xlu0 %v317, 48
        %v400 = vpop.permute.xlu0 %399
        %401 = vrot.lane.b32.xlu0 %v318, 48
        %v402 = vpop.permute.xlu0 %401
        %407 = vrot.lane.b32.xlu0 %v319, 64
        %v408 = vpop.permute.xlu0 %407
        %409 = vrot.lane.b32.xlu0 %v320, 64
        %v410 = vpop.permute.xlu0 %409
        %415 = vrot.lane.b32.xlu0 %v321, 80
        %v416 = vpop.permute.xlu0 %415
        %417 = vrot.lane.b32.xlu0 %v322, 80
        %v418 = vpop.permute.xlu0 %417
        %423 = vrot.lane.b32.xlu0 %v323, 96
        %v424 = vpop.permute.xlu0 %423
        %425 = vrot.lane.b32.xlu0 %v324, 96
        %v426 = vpop.permute.xlu0 %425
        %vm429 = vcmask 130048
        %v430 = vsel %vm429, %v295, %v328
        %v431 = vsel %vm429, %v296, %v330
        %vm432 = vcmask 261120
        %v433 = vsel %vm432, %v430, %v336
        %v434 = vsel %vm432, %v431, %v338
        %vm435 = vcmask 392192
        %v436 = vsel %vm435, %v433, %v344
        %v437 = vsel %vm435, %v434, %v346
        %vm438 = vcmask 523264
        %v439 = vsel %vm438, %v436, %v352
        %v440 = vsel %vm438, %v437, %v354
        %vm441 = vcmask 654336
        %v442 = vsel %vm441, %v439, %v360
        %v443 = vsel %vm441, %v440, %v362
        %vm444 = vcmask 785408
        %v445 = vsel %vm444, %v442, %v368
        %v446 = vsel %vm444, %v443, %v370
        %vm447 = vcmask 916480
        %v448 = vsel %vm447, %v445, %v376
        %v449 = vsel %vm447, %v446, %v378
        %v450 = vsel %vm429, %v311, %v384
        %v451 = vsel %vm429, %v312, %v386
        %v452 = vsel %vm432, %v450, %v392
        %v453 = vsel %vm432, %v451, %v394
        %v454 = vsel %vm435, %v452, %v400
        %v455 = vsel %vm435, %v453, %v402
        %v456 = vsel %vm438, %v454, %v408
        %v457 = vsel %vm438, %v455, %v410
        %v458 = vsel %vm441, %v456, %v416
        %v459 = vsel %vm441, %v457, %v418
        %v460 = vsel %vm444, %v458, %v424
        %v461 = vsel %vm444, %v459, %v426
        %v463 = vsel %vm429, %v291, 0
        %v466 = vsel %vm429, %v292, 0
        %468 = vmatpush.msra.mxu0 0.0
        %469 = vmatpush.msra.mxu0 0.0
        %470 = vmatpush.msra.mxu0 0.0
        %471 = vmatpush.msra.mxu0 0.0
        %472 = vmatpush.msra.mxu0 0.0
        %473 = vmatpush.msra.mxu0 0.0
        %474 = vmatpush.msra.mxu0 0.0
        %475 = vmatpush.msra.mxu0 0.0
        %476 = vmatpush.msra.mxu0 0.0
        %477 = vmatpush.msra.mxu0 0.0
        %478 = vmatpush.msra.mxu0 0.0
        %479 = vmatpush.msra.mxu0 0.0
        %480 = vmatpush.msra.mxu0 0.0
        %481 = vmatpush.msra.mxu0 0.0
        %482 = vmatpush.msra.mxu0 %v449
        %483 = vmatpush.msra.mxu0 %v448
        %484 = vmatmul.f32.gmra.mxu0 %v463
        %v485 = vpop.f32.mrf.mxu0
        %v486 = vadd.f32 0.0, %v485
        %487 = vmatmul.f32.gmra.mxu0 %v466
        %v488 = vpop.f32.mrf.mxu0
        %v489 = vadd.f32 0.0, %v488
        %490 = vdwg.mxu0
        %491 = vmatpush.msra.mxu0 0.0
        %492 = vmatpush.msra.mxu0 0.0
        %493 = vmatpush.msra.mxu0 0.0
        %494 = vmatpush.msra.mxu0 0.0
        %495 = vmatpush.msra.mxu0 0.0
        %496 = vmatpush.msra.mxu0 0.0
        %497 = vmatpush.msra.mxu0 0.0
        %498 = vmatpush.msra.mxu0 0.0
        %499 = vmatpush.msra.mxu0 0.0
        %500 = vmatpush.msra.mxu0 0.0
        %501 = vmatpush.msra.mxu0 0.0
        %502 = vmatpush.msra.mxu0 0.0
        %503 = vmatpush.msra.mxu0 0.0
        %504 = vmatpush.msra.mxu0 0.0
        %505 = vmatpush.msra.mxu0 %v461
        %506 = vmatpush.msra.mxu0 %v460
        %507 = vmatmul.f32.gmra.mxu0 %v463
        %v508 = vpop.f32.mrf.mxu0
        %v509 = vadd.f32 0.0, %v508
        %510 = vmatmul.f32.gmra.mxu0 %v466
        %v511 = vpop.f32.mrf.mxu0
        %v512 = vadd.f32 0.0, %v511
        %513 = vdwg.mxu0
        %516 = vrot.lane.b32.xlu0 %v486, 112
        %v517 = vpop.permute.xlu0 %516
        %518 = vrot.lane.b32.xlu0 %v489, 112
        %v519 = vpop.permute.xlu0 %518
        %520 = vrot.lane.b32.xlu0 %v486, 96
        %v521 = vpop.permute.xlu0 %520
        %522 = vrot.lane.b32.xlu0 %v489, 96
        %v523 = vpop.permute.xlu0 %522
        %524 = vrot.lane.b32.xlu0 %v486, 80
        %v525 = vpop.permute.xlu0 %524
        %526 = vrot.lane.b32.xlu0 %v489, 80
        %v527 = vpop.permute.xlu0 %526
        %528 = vrot.lane.b32.xlu0 %v486, 64
        %v529 = vpop.permute.xlu0 %528
        %530 = vrot.lane.b32.xlu0 %v489, 64
        %v531 = vpop.permute.xlu0 %530
        %532 = vrot.lane.b32.xlu0 %v486, 48
        %v533 = vpop.permute.xlu0 %532
        %534 = vrot.lane.b32.xlu0 %v489, 48
        %v535 = vpop.permute.xlu0 %534
        %536 = vrot.lane.b32.xlu0 %v486, 32
        %v537 = vpop.permute.xlu0 %536
        %538 = vrot.lane.b32.xlu0 %v489, 32
        %v539 = vpop.permute.xlu0 %538
        %540 = vrot.lane.b32.xlu0 %v486, 16
        %v541 = vpop.permute.xlu0 %540
        %542 = vrot.lane.b32.xlu0 %v489, 16
        %v543 = vpop.permute.xlu0 %542
        %546 = vrot.lane.b32.xlu0 %v509, 112
        %v547 = vpop.permute.xlu0 %546
        %548 = vrot.lane.b32.xlu0 %v512, 112
        %v549 = vpop.permute.xlu0 %548
        %550 = vrot.lane.b32.xlu0 %v509, 96
        %v551 = vpop.permute.xlu0 %550
        %552 = vrot.lane.b32.xlu0 %v512, 96
        %v553 = vpop.permute.xlu0 %552
        %554 = vrot.lane.b32.xlu0 %v509, 80
        %v555 = vpop.permute.xlu0 %554
        %556 = vrot.lane.b32.xlu0 %v512, 80
        %v557 = vpop.permute.xlu0 %556
        %558 = vrot.lane.b32.xlu0 %v509, 64
        %v559 = vpop.permute.xlu0 %558
        %560 = vrot.lane.b32.xlu0 %v512, 64
        %v561 = vpop.permute.xlu0 %560
        %562 = vrot.lane.b32.xlu0 %v509, 48
        %v563 = vpop.permute.xlu0 %562
        %564 = vrot.lane.b32.xlu0 %v512, 48
        %v565 = vpop.permute.xlu0 %564
        %566 = vrot.lane.b32.xlu0 %v509, 32
        %v567 = vpop.permute.xlu0 %566
        %568 = vrot.lane.b32.xlu0 %v512, 32
        %v569 = vpop.permute.xlu0 %568
        %v570 = vsel %vm429, %v486, 0
        %v572 = vsel %vm429, %v489, 0
        %v574 = vsel %vm429, %v517, 0
        %v576 = vsel %vm429, %v519, 0
        %v578 = vsel %vm429, %v521, 0
        %v580 = vsel %vm429, %v523, 0
        %v582 = vsel %vm429, %v525, 0
        %v584 = vsel %vm429, %v527, 0
        %v586 = vsel %vm429, %v529, 0
        %v588 = vsel %vm429, %v531, 0
        %v590 = vsel %vm429, %v533, 0
        %v592 = vsel %vm429, %v535, 0
        %v594 = vsel %vm429, %v537, 0
        %v596 = vsel %vm429, %v539, 0
        %v598 = vsel %vm429, %v541, 0
        %v600 = vsel %vm429, %v543, 0
        %v602 = vsel %vm429, %v509, 0
        %v604 = vsel %vm429, %v512, 0
        %v606 = vsel %vm429, %v547, 0
        %v608 = vsel %vm429, %v549, 0
        %v610 = vsel %vm429, %v551, 0
        %v612 = vsel %vm429, %v553, 0
        %v614 = vsel %vm429, %v555, 0
        %v616 = vsel %vm429, %v557, 0
        %v618 = vsel %vm429, %v559, 0
        %v620 = vsel %vm429, %v561, 0
        %v622 = vsel %vm429, %v563, 0
        %v624 = vsel %vm429, %v565, 0
        %v626 = vsel %vm429, %v567, 0
        %v628 = vsel %vm429, %v569, 0
        %630 = vmatpush.msra.mxu0 0.0
        %631 = vmatpush.msra.mxu0 0.0
        %632 = vmatpush.msra.mxu0 0.0
        %633 = vmatpush.msra.mxu0 0.0
        %634 = vmatpush.msra.mxu0 0.0
        %635 = vmatpush.msra.mxu0 0.0
        %636 = vmatpush.msra.mxu0 0.0
        %637 = vmatpush.msra.mxu0 0.0
        %638 = vmatpush.msra.mxu0 0.0
        %639 = vmatpush.msra.mxu0 0.0
        %640 = vmatpush.msra.mxu0 0.0
        %641 = vmatpush.msra.mxu0 0.0
        %642 = vmatpush.msra.mxu0 0.0
        %643 = vmatpush.msra.mxu0 0.0
        %644 = vmatpush.msra.mxu0 %v294
        %645 = vmatpush.msra.mxu0 %v293
        %646 = vmatmul.f32.gmra.mxu0 %v570
        %v647 = vpop.f32.mrf.mxu0
        %v648 = vadd.f32 0.0, %v647
        %649 = vmatmul.f32.gmra.mxu0 %v572
        %v650 = vpop.f32.mrf.mxu0
        %v651 = vadd.f32 0.0, %v650
        %652 = vmatmul.f32.gmra.mxu0 %v574
        %v653 = vpop.f32.mrf.mxu0
        %v654 = vadd.f32 0.0, %v653
        %655 = vmatmul.f32.gmra.mxu0 %v576
        %v656 = vpop.f32.mrf.mxu0
        %v657 = vadd.f32 0.0, %v656
        %658 = vmatmul.f32.gmra.mxu0 %v578
        %v659 = vpop.f32.mrf.mxu0
        %v660 = vadd.f32 0.0, %v659
        %661 = vmatmul.f32.gmra.mxu0 %v580
        %v662 = vpop.f32.mrf.mxu0
        %v663 = vadd.f32 0.0, %v662
        %664 = vmatmul.f32.gmra.mxu0 %v582
        %v665 = vpop.f32.mrf.mxu0
        %v666 = vadd.f32 0.0, %v665
        %667 = vmatmul.f32.gmra.mxu0 %v584
        %v668 = vpop.f32.mrf.mxu0
        %v669 = vadd.f32 0.0, %v668
        %670 = vmatmul.f32.gmra.mxu0 %v586
        %v671 = vpop.f32.mrf.mxu0
        %v672 = vadd.f32 0.0, %v671
        %673 = vmatmul.f32.gmra.mxu0 %v588
        %v674 = vpop.f32.mrf.mxu0
        %v675 = vadd.f32 0.0, %v674
        %676 = vmatmul.f32.gmra.mxu0 %v590
        %v677 = vpop.f32.mrf.mxu0
        %v678 = vadd.f32 0.0, %v677
        %679 = vmatmul.f32.gmra.mxu0 %v592
        %v680 = vpop.f32.mrf.mxu0
        %v681 = vadd.f32 0.0, %v680
        %682 = vmatmul.f32.gmra.mxu0 %v594
        %v683 = vpop.f32.mrf.mxu0
        %v684 = vadd.f32 0.0, %v683
        %685 = vmatmul.f32.gmra.mxu0 %v596
        %v686 = vpop.f32.mrf.mxu0
        %v687 = vadd.f32 0.0, %v686
        %688 = vmatmul.f32.gmra.mxu0 %v598
        %v689 = vpop.f32.mrf.mxu0
        %v690 = vadd.f32 0.0, %v689
        %691 = vmatmul.f32.gmra.mxu0 %v600
        %v692 = vpop.f32.mrf.mxu0
        %v693 = vadd.f32 0.0, %v692
        %694 = vmatmul.f32.gmra.mxu0 %v602
        %v695 = vpop.f32.mrf.mxu0
        %v696 = vadd.f32 0.0, %v695
        %697 = vmatmul.f32.gmra.mxu0 %v604
        %v698 = vpop.f32.mrf.mxu0
        %v699 = vadd.f32 0.0, %v698
        %700 = vmatmul.f32.gmra.mxu0 %v606
        %v701 = vpop.f32.mrf.mxu0
        %v702 = vadd.f32 0.0, %v701
        %703 = vmatmul.f32.gmra.mxu0 %v608
        %v704 = vpop.f32.mrf.mxu0
        %v705 = vadd.f32 0.0, %v704
        %706 = vmatmul.f32.gmra.mxu0 %v610
        %v707 = vpop.f32.mrf.mxu0
        %v708 = vadd.f32 0.0, %v707
        %709 = vmatmul.f32.gmra.mxu0 %v612
        %v710 = vpop.f32.mrf.mxu0
        %v711 = vadd.f32 0.0, %v710
        %712 = vmatmul.f32.gmra.mxu0 %v614
        %v713 = vpop.f32.mrf.mxu0
        %v714 = vadd.f32 0.0, %v713
        %715 = vmatmul.f32.gmra.mxu0 %v616
        %v716 = vpop.f32.mrf.mxu0
        %v717 = vadd.f32 0.0, %v716
        %718 = vmatmul.f32.gmra.mxu0 %v618
        %v719 = vpop.f32.mrf.mxu0
        %v720 = vadd.f32 0.0, %v719
        %721 = vmatmul.f32.gmra.mxu0 %v620
        %v722 = vpop.f32.mrf.mxu0
        %v723 = vadd.f32 0.0, %v722
        %724 = vmatmul.f32.gmra.mxu0 %v622
        %v725 = vpop.f32.mrf.mxu0
        %v726 = vadd.f32 0.0, %v725
        %727 = vmatmul.f32.gmra.mxu0 %v624
        %v728 = vpop.f32.mrf.mxu0
        %v729 = vadd.f32 0.0, %v728
        %730 = vmatmul.f32.gmra.mxu0 %v626
        %v731 = vpop.f32.mrf.mxu0
        %v732 = vadd.f32 0.0, %v731
        %733 = vmatmul.f32.gmra.mxu0 %v628
        %v734 = vpop.f32.mrf.mxu0
        %v735 = vadd.f32 0.0, %v734
        %736 = vdwg.mxu0
        %v737 = vmul.f32 %v648, %v648
        %v738 = vmul.f32 %v651, %v651
        %v739 = vmul.f32 %v654, %v654
        %v740 = vmul.f32 %v657, %v657
        %v741 = vmul.f32 %v660, %v660
        %v742 = vmul.f32 %v663, %v663
        %v743 = vmul.f32 %v666, %v666
        %v744 = vmul.f32 %v669, %v669
        %v745 = vmul.f32 %v672, %v672
        %v746 = vmul.f32 %v675, %v675
        %v747 = vmul.f32 %v678, %v678
        %v748 = vmul.f32 %v681, %v681
        %v749 = vmul.f32 %v648, %v666
        %v750 = vmul.f32 %v651, %v669
        %v751 = vmul.f32 %v654, %v672
        %v752 = vmul.f32 %v657, %v675
        %v753 = vmul.f32 %v660, %v678
        %v754 = vmul.f32 %v663, %v681
        %v755 = vsub.f32 %v684, %v737
        %v756 = vsub.f32 %v687, %v738
        %v757 = vsub.f32 %v690, %v739
        %v758 = vsub.f32 %v693, %v740
        %v759 = vsub.f32 %v696, %v741
        %v760 = vsub.f32 %v699, %v742
        %v761 = vsub.f32 %v702, %v743
        %v762 = vsub.f32 %v705, %v744
        %v763 = vsub.f32 %v708, %v745
        %v764 = vsub.f32 %v711, %v746
        %v765 = vsub.f32 %v714, %v747
        %v766 = vsub.f32 %v717, %v748
        %v767 = vsub.f32 %v720, %v749
        %v768 = vsub.f32 %v723, %v750
        %v769 = vsub.f32 %v726, %v751
        %v770 = vsub.f32 %v729, %v752
        %v771 = vsub.f32 %v732, %v753
        %v772 = vsub.f32 %v735, %v754
        %v773 = vmul.f32 %v749, 2.0
        %v774 = vmul.f32 %v750, 2.0
        %v775 = vmul.f32 %v751, 2.0
        %v776 = vmul.f32 %v752, 2.0
        %v777 = vmul.f32 %v753, 2.0
        %v778 = vmul.f32 %v754, 2.0
        %v779 = vadd.f32 %v773, 0.0001
        %v780 = vadd.f32 %v774, 0.0001
        %v781 = vadd.f32 %v775, 0.0001
        %v782 = vadd.f32 %v776, 0.0001
        %v783 = vadd.f32 %v777, 0.0001
        %v784 = vadd.f32 %v778, 0.0001
        %v785 = vmul.f32 %v767, 2.0
        %v786 = vmul.f32 %v768, 2.0
        %v787 = vmul.f32 %v769, 2.0
        %v788 = vmul.f32 %v770, 2.0
        %v789 = vmul.f32 %v771, 2.0
        %v790 = vmul.f32 %v772, 2.0
        %v791 = vadd.f32 %v785, 0.0009
        %v792 = vadd.f32 %v786, 0.0009
        %v793 = vadd.f32 %v787, 0.0009
        %v794 = vadd.f32 %v788, 0.0009
        %v795 = vadd.f32 %v789, 0.0009
        %v796 = vadd.f32 %v790, 0.0009
        %v797 = vmul.f32 %v779, %v791
        %v798 = vmul.f32 %v780, %v792
        %v799 = vmul.f32 %v781, %v793
        %v800 = vmul.f32 %v782, %v794
        %v801 = vmul.f32 %v783, %v795
        %v802 = vmul.f32 %v784, %v796
        %v803 = vadd.f32 %v737, %v743
        %v804 = vadd.f32 %v738, %v744
        %v805 = vadd.f32 %v739, %v745
        %v806 = vadd.f32 %v740, %v746
        %v807 = vadd.f32 %v741, %v747
        %v808 = vadd.f32 %v742, %v748
        %v809 = vadd.f32 %v803, 0.0001
        %v810 = vadd.f32 %v804, 0.0001
        %v811 = vadd.f32 %v805, 0.0001
        %v812 = vadd.f32 %v806, 0.0001
        %v813 = vadd.f32 %v807, 0.0001
        %v814 = vadd.f32 %v808, 0.0001
        %v815 = vadd.f32 %v755, %v761
        %v816 = vadd.f32 %v756, %v762
        %v817 = vadd.f32 %v757, %v763
        %v818 = vadd.f32 %v758, %v764
        %v819 = vadd.f32 %v759, %v765
        %v820 = vadd.f32 %v760, %v766
        %v821 = vadd.f32 %v815, 0.0009
        %v822 = vadd.f32 %v816, 0.0009
        %v823 = vadd.f32 %v817, 0.0009
        %v824 = vadd.f32 %v818, 0.0009
        %v825 = vadd.f32 %v819, 0.0009
        %v826 = vadd.f32 %v820, 0.0009
        %v827 = vmul.f32 %v809, %v821
        %v828 = vmul.f32 %v810, %v822
        %v829 = vmul.f32 %v811, %v823
        %v830 = vmul.f32 %v812, %v824
        %v831 = vmul.f32 %v813, %v825
        %v832 = vmul.f32 %v814, %v826
        %v833 = vrcp.pop %v827
        %v834 = vmul.f32 %v827, %v833
        %v835 = vsub.f32 1.0, %v834
        %v836 = vmul.f32 %v833, %v835
        %v837 = vadd.f32 %v833, %v836
        %vm838 = vweird.f32 %v827
        %vm839 = vweird.f32 %v833
        %vm840 = vmor %vm838, %vm839
        %v841 = vsel %vm840, %v833, %v837
        %v842 = vand.u32 2147483647, %v827
        %vm843 = vcmp.eq.f32.partialorder %v842, 8.507059e+37
        %v844 = vand.u32 %v827, 2147483648
        %v845 = vor.u32 1.1754944e-38, %v844
        %v846 = vsel %vm843, %v845, %v841
        %v847 = vrcp.pop %v828
        %v848 = vmul.f32 %v828, %v847
        %v849 = vsub.f32 1.0, %v848
        %v850 = vmul.f32 %v847, %v849
        %v851 = vadd.f32 %v847, %v850
        %vm852 = vweird.f32 %v828
        %vm853 = vweird.f32 %v847
        %vm854 = vmor %vm852, %vm853
        %v855 = vsel %vm854, %v847, %v851
        %v856 = vand.u32 2147483647, %v828
        %vm857 = vcmp.eq.f32.partialorder %v856, 8.507059e+37
        %v858 = vand.u32 %v828, 2147483648
        %v859 = vor.u32 1.1754944e-38, %v858
        %v860 = vsel %vm857, %v859, %v855
        %v861 = vrcp.pop %v829
        %v862 = vmul.f32 %v829, %v861
        %v863 = vsub.f32 1.0, %v862
        %v864 = vmul.f32 %v861, %v863
        %v865 = vadd.f32 %v861, %v864
        %vm866 = vweird.f32 %v829
        %vm867 = vweird.f32 %v861
        %vm868 = vmor %vm866, %vm867
        %v869 = vsel %vm868, %v861, %v865
        %v870 = vand.u32 2147483647, %v829
        %vm871 = vcmp.eq.f32.partialorder %v870, 8.507059e+37
        %v872 = vand.u32 %v829, 2147483648
        %v873 = vor.u32 1.1754944e-38, %v872
        %v874 = vsel %vm871, %v873, %v869
        %v875 = vrcp.pop %v830
        %v876 = vmul.f32 %v830, %v875
        %v877 = vsub.f32 1.0, %v876
        %v878 = vmul.f32 %v875, %v877
        %v879 = vadd.f32 %v875, %v878
        %vm880 = vweird.f32 %v830
        %vm881 = vweird.f32 %v875
        %vm882 = vmor %vm880, %vm881
        %v883 = vsel %vm882, %v875, %v879
        %v884 = vand.u32 2147483647, %v830
        %vm885 = vcmp.eq.f32.partialorder %v884, 8.507059e+37
        %v886 = vand.u32 %v830, 2147483648
        %v887 = vor.u32 1.1754944e-38, %v886
        %v888 = vsel %vm885, %v887, %v883
        %v889 = vrcp.pop %v831
        %v890 = vmul.f32 %v831, %v889
        %v891 = vsub.f32 1.0, %v890
        %v892 = vmul.f32 %v889, %v891
        %v893 = vadd.f32 %v889, %v892
        %vm894 = vweird.f32 %v831
        %vm895 = vweird.f32 %v889
        %vm896 = vmor %vm894, %vm895
        %v897 = vsel %vm896, %v889, %v893
        %v898 = vand.u32 2147483647, %v831
        %vm899 = vcmp.eq.f32.partialorder %v898, 8.507059e+37
        %v900 = vand.u32 %v831, 2147483648
        %v901 = vor.u32 1.1754944e-38, %v900
        %v902 = vsel %vm899, %v901, %v897
        %v903 = vrcp.pop %v832
        %v904 = vmul.f32 %v832, %v903
        %v905 = vsub.f32 1.0, %v904
        %v906 = vmul.f32 %v903, %v905
        %v907 = vadd.f32 %v903, %v906
        %vm908 = vweird.f32 %v832
        %vm909 = vweird.f32 %v903
        %vm910 = vmor %vm908, %vm909
        %v911 = vsel %vm910, %v903, %v907
        %v912 = vand.u32 2147483647, %v832
        %vm913 = vcmp.eq.f32.partialorder %v912, 8.507059e+37
        %v914 = vand.u32 %v832, 2147483648
        %v915 = vor.u32 1.1754944e-38, %v914
        %v916 = vsel %vm913, %v915, %v911
        %v917 = vmul.f32 %v797, %v846
        %v918 = vmul.f32 %v798, %v860
        %v919 = vmul.f32 %v799, %v874
        %v920 = vmul.f32 %v800, %v888
        %v921 = vmul.f32 %v801, %v902
        %v922 = vmul.f32 %v802, %v916
        %v923 = vsel %vm429, %v917, 0.0
        %v924 = vsel %vm429, %v918, 0.0
        %v925 = vadd.f32 %v923, %v924
        %v926 = vsel %vm429, %v919, 0.0
        %v927 = vadd.f32 %v925, %v926
        %v928 = vsel %vm429, %v920, 0.0
        %v929 = vadd.f32 %v927, %v928
        %v930 = vsel %vm429, %v921, 0.0
        %v931 = vadd.f32 %v929, %v930
        %v932 = vsel %vm429, %v922, 0.0
        %v933 = vadd.f32 %v931, %v932
        %934 = vadd.xlane.f32.xlu0 %v933
        %v935 = vpop.xlane.xlu0 %934
        %v936 = vrot.slane %v935, 4
        %v937 = vadd.f32 %v935, %v936
        %v938 = vrot.slane %v937, 2
        %v939 = vadd.f32 %v937, %v938
        %v940 = vrot.slane %v939, 1
        %v941 = vadd.f32 %v939, %v940
        %s942 = vtos %v941
        %v943 = vstv %s942
        %v944 = vadd.f32 %v943, 0.0
        %945 = vst [vmem:[%s288] sm:$0x1] %v944
        %s946 = sand.u32 %s122, 1
        %s947 = scalar_lea.sflag [#allocation4], %s946
        %s948 = sand.u32 %s122, 1
        %s949 = scalar_lea.vmem [#allocation9], %s948
        // Predicated region
        $region53: #{tpu_custom_call.1} parent=35 // pred_check
          %p950 = pneg %p132
        $region54: #{tpu_custom_call.1} parent=35 // pred_check_branch
          %952 = sbr.rel (%p950) target = $region56
        $region55: #{tpu_custom_call.1} parent=35 // pred_region
          %954 = vsyncadd %s947, 0
          %s955 = scalar_lea.hbm %s4, %s20
          %s957 = sshll.u32 %s949, 4
          %s958 = int_to_ptr.vmem [resolvable:$true] %s957
          %s959 = sshll.u32 %s955, 4
          %s960 = int_to_ptr.hbm [resolvable:$true] %s959
          %962 = dma.vmem_to_hbm [thread:$0]  %s958, 16, %s960, %s947
        $region56: #{tpu_custom_call.1} parent=35 // pred_fallthru
          _
      $region36: #{tpu_custom_call.1} parent=5 // pred_fallthru
        _
      %p963 = scmp.le.s32.totalorder 2, %s15
      // Predicated region
      $region57: #{tpu_custom_call.1} parent=5 // pred_check
        %p964 = pneg %p963
      $region58: #{tpu_custom_call.1} parent=5 // pred_check_branch
        %966 = sbr.rel (%p964) target = $region60
      $region59: #{tpu_custom_call.1} parent=5 // pred_region
        %s967 = ssub.s32 %s15, 2
        // Predicated region
        $region61: #{tpu_custom_call.1} parent=59 // pred_check
          %p968 = pneg %p138
        $region62: #{tpu_custom_call.1} parent=59 // pred_check_branch
          %970 = sbr.rel (%p968) target = $region64
        $region63: #{tpu_custom_call.1} parent=59 // pred_region
          %s971 = sand.u32 %s123, 1
          %s972 = scalar_lea.sflag [#allocation4], %s971
          %s973 = sand.u32 %s123, 1
          %s974 = scalar_lea.vmem [#allocation9], %s973
          %976 = dma.done %s972, 16
        $region64: #{tpu_custom_call.1} parent=59 // pred_fallthru
          _
      $region60: #{tpu_custom_call.1} parent=5 // pred_fallthru
        _
    $region6: #{tpu_custom_call.1} parent=1 // loop_footer
      %s19 = sadd.s32 1, %s15
    $region7: #{tpu_custom_call.1} parent=1 // loop_footer_branch
      %14 = sbr.rel target = $region3
    $region8: #{tpu_custom_call.1} parent=1 // loop_exit
      _
    %977 = vsyncpa [#allocation3], 1
    %s978 = scalar_lea.sflag [#allocation3], 1
    %979 = vsyncpa %s978, 1
    %980 = vsyncpa [#allocation6], 1
    %981 = vsyncpa [#allocation4], 1
    %s982 = scalar_lea.sflag [#allocation4], 1
    %983 = vsyncpa %s982, 1

// kernel: tpu_custom_call.1
$region0: #{tpu_custom_call.1}
  #allocation0 [shape = 'u32[]', space=smem, size = 0x4, offset = 0x4, fixed_abs, tag = 'smem constant byte address 0x4 - core index']
  #allocation1 [shape = 'u32[72,128]{1,0:T(1,128)}', space=vmem, size = 0x9000, scoped, tag = 'internal scratch']
  %s0 = inlined_call_operand.hbm [shape: f32[16,16], index: 0, kind: input, shape index: {}]
  %s1 = inlined_call_operand.hbm [shape: f32[16,16], index: 1, kind: input, shape index: {}]
  %s2 = inlined_call_operand.hbm [shape: f32[6,16,16], index: 2, kind: input, shape index: {}]
  %s3 = inlined_call_operand.hbm [shape: f32[6,16,16], index: 3, kind: input, shape index: {}]
  %s4 = inlined_call_operand.hbm [shape: f32[2,1,128], index: 4, kind: output, shape index: {}]
  %s5 = sld [smem:[#allocation0]]
  $region65: #{tpu_custom_call.1} parent=0
    _
  %s7 = ssub.s32 1, %s5
  %s8 = scalar_select 0, %s7, %s5
  $region1: #{tpu_custom_call.1} parent=0
    #allocation2 [shape = 'u8[8192]{0}', space=vmem, size = 0x2000, scoped, tag = 'input window, operand 0, single buffered']
    #allocation3 [shape = 's32[2]{0}', space=sflag, size = 0x8, scoped, tag = 'scoped memory for tpu_custom_call.1']
    #allocation4 [shape = 's32[2]{0}', space=sflag, size = 0x8, scoped, tag = 'scoped memory for tpu_custom_call.1']
    #allocation5 [shape = 'u8[8192]{0}', space=vmem, size = 0x2000, scoped, tag = 'input window, operand 1, single buffered']
    #allocation6 [shape = 's32[1]{0}', space=sflag, size = 0x4, scoped, tag = 'scoped memory for tpu_custom_call.1']
    #allocation7 [shape = 'u8[49152]{0}', space=vmem, size = 0xc000, scoped, tag = 'input window, operand 2']
    #allocation8 [shape = 'u8[49152]{0}', space=vmem, size = 0xc000, scoped, tag = 'input window, operand 3']
    #allocation9 [shape = 'u8[1024]{0}', space=vmem, size = 0x400, scoped, tag = 'output window, operand 0']
    %9 = vsyncpa [#allocation3], 0
    %10 = vsyncpa [#allocation6], 0
    %11 = vsyncpa [#allocation4], 0
    %s12 = scalar_lea.sflag [#allocation4], 1
    %13 = vsyncpa %s12, 0
    loop: start=0, step=1, limit=4
    $region2: #{tpu_custom_call.1} parent=1 // loop_pre_header
      _
    $region3: #{tpu_custom_call.1} parent=1 // loop_header
      %s15 = sphi 0, %s19
      %p16 = scmp.ge.s32.totalorder %s15, 4
      %s23 = sphi 0, %s23
      %s25 = sphi 0, %s23
      %s26 = sphi 0, %s25
      %s40 = sphi 0, %s26
      %s44 = sphi 0, %s44
      %s46 = sphi 0, %s44
      %s47 = sphi 0, %s46
      %s61 = sphi 0, %s47
      %s67 = sphi 0, %s69
      %s70 = sphi 0, %s67
      %s71 = sphi 0, %s70
      %s87 = sphi 0, %s71
      %s93 = sphi 0, %s95
      %s96 = sphi 0, %s93
      %s97 = sphi 0, %s96
      %s113 = sphi 0, %s97
      %s119 = sphi 0, %s121
      %s122 = sphi 0, %s119
      %s123 = sphi 0, %s122
      %s139 = sphi 0, %s123
    $region4: #{tpu_custom_call.1} parent=1 // loop_header_branch
      %18 = sbr.rel (%p16) target = $region8
    $region5: #{tpu_custom_call.1} parent=1 // loop_body
      %s20 = ssub.s32 %s15, 1
      %s21 = ssub.s32 %s15, 2
      %s22 = sadd.s32 %s15, 1
      %s24 = sadd.s32 %s23, 1
      %p27 = scmp.eq.s32.totalorder %s15, 1
      %p28 = scmp.ne.s32.totalorder %s23, %s25
      %p29 = scmp.eq.s32.totalorder %s15, 0
      %p30 = por %p28, %p29
      %p31 = scmp.ne.s32.totalorder %s23, %s25
      %p32 = scmp.eq.s32.totalorder %s20, 1
      %p33 = por %p31, %p32
      %p34 = scmp.ne.s32.totalorder %s25, %s26
      %p35 = scmp.eq.s32.totalorder %s20, 0
      %p36 = por %p34, %p35
      %p37 = scmp.ne.s32.totalorder %s25, %s26
      %p38 = scmp.eq.s32.totalorder %s21, 1
      %p39 = por %p37, %p38
      %p41 = scmp.ne.s32.totalorder %s26, %s40
      %p42 = scmp.eq.s32.totalorder %s21, 0
      %p43 = por %p41, %p42
      %s45 = sadd.s32 %s44, 1
      %p48 = scmp.eq.s32.totalorder %s15, 1
      %p49 = scmp.ne.s32.totalorder %s44, %s46
      %p50 = scmp.eq.s32.totalorder %s15, 0
      %p51 = por %p49, %p50
      %p52 = scmp.ne.s32.totalorder %s44, %s46
      %p53 = scmp.eq.s32.totalorder %s20, 1
      %p54 = por %p52, %p53
      %p55 = scmp.ne.s32.totalorder %s46, %s47
      %p56 = scmp.eq.s32.totalorder %s20, 0
      %p57 = por %p55, %p56
      %p58 = scmp.ne.s32.totalorder %s46, %s47
      %p59 = scmp.eq.s32.totalorder %s21, 1
      %p60 = por %p58, %p59
      %p62 = scmp.ne.s32.totalorder %s47, %s61
      %p63 = scmp.eq.s32.totalorder %s21, 0
      %p64 = por %p62, %p63
      %s65 = ssub.s32 %s15, %s22
      %p66 = scmp.eq.s32.totalorder %s65, 0
      %s68 = sadd.s32 %s67, 1
      %s69 = scalar_select %p66, %s67, %s68
      %p72 = pneg %p66
      %p73 = scmp.eq.s32.totalorder %s15, 1
      %p74 = por %p72, %p73
      %p75 = scmp.ne.s32.totalorder %s67, %s70
      %p76 = scmp.eq.s32.totalorder %s15, 0
      %p77 = por %p75, %p76
      %p78 = scmp.ne.s32.totalorder %s67, %s70
      %p79 = scmp.eq.s32.totalorder %s20, 1
      %p80 = por %p78, %p79
      %p81 = scmp.ne.s32.totalorder %s70, %s71
      %p82 = scmp.eq.s32.totalorder %s20, 0
      %p83 = por %p81, %p82
      %p84 = scmp.ne.s32.totalorder %s70, %s71
      %p85 = scmp.eq.s32.totalorder %s21, 1
      %p86 = por %p84, %p85
      %p88 = scmp.ne.s32.totalorder %s71, %s87
      %p89 = scmp.eq.s32.totalorder %s21, 0
      %p90 = por %p88, %p89
      %s91 = ssub.s32 %s15, %s22
      %p92 = scmp.eq.s32.totalorder %s91, 0
      %s94 = sadd.s32 %s93, 1
      %s95 = scalar_select %p92, %s93, %s94
      %p98 = pneg %p92
      %p99 = scmp.eq.s32.totalorder %s15, 1
      %p100 = por %p98, %p99
      %p101 = scmp.ne.s32.totalorder %s93, %s96
      %p102 = scmp.eq.s32.totalorder %s15, 0
      %p103 = por %p101, %p102
      %p104 = scmp.ne.s32.totalorder %s93, %s96
      %p105 = scmp.eq.s32.totalorder %s20, 1
      %p106 = por %p104, %p105
      %p107 = scmp.ne.s32.totalorder %s96, %s97
      %p108 = scmp.eq.s32.totalorder %s20, 0
      %p109 = por %p107, %p108
      %p110 = scmp.ne.s32.totalorder %s96, %s97
      %p111 = scmp.eq.s32.totalorder %s21, 1
      %p112 = por %p110, %p111
      %p114 = scmp.ne.s32.totalorder %s97, %s113
      %p115 = scmp.eq.s32.totalorder %s21, 0
      %p116 = por %p114, %p115
      %s117 = ssub.s32 %s15, %s22
      %p118 = scmp.eq.s32.totalorder %s117, 0
      %s120 = sadd.s32 %s119, 1
      %s121 = scalar_select %p118, %s119, %s120
      %p124 = pneg %p118
      %p125 = scmp.eq.s32.totalorder %s15, 1
      %p126 = por %p124, %p125
      %p127 = scmp.ne.s32.totalorder %s119, %s122
      %p128 = scmp.eq.s32.totalorder %s15, 0
      %p129 = por %p127, %p128
      %p130 = scmp.ne.s32.totalorder %s119, %s122
      %p131 = scmp.eq.s32.totalorder %s20, 1
      %p132 = por %p130, %p131
      %p133 = scmp.ne.s32.totalorder %s122, %s123
      %p134 = scmp.eq.s32.totalorder %s20, 0
      %p135 = por %p133, %p134
      %p136 = scmp.ne.s32.totalorder %s122, %s123
      %p137 = scmp.eq.s32.totalorder %s21, 1
      %p138 = por %p136, %p137
      %p140 = scmp.ne.s32.totalorder %s123, %s139
      %p141 = scmp.eq.s32.totalorder %s21, 0
      %p142 = por %p140, %p141
      %p143 = scmp.le.s32.totalorder 1, %s15
      %p144 = scmp.lt.s32.totalorder %s15, 3
      %p145 = pnand %p143, %p144
      %p146 = pneg %p145
      // Predicated region
      $region9: #{tpu_custom_call.1} parent=5 // pred_check
        _
      $region10: #{tpu_custom_call.1} parent=5 // pred_check_branch
        %148 = sbr.rel (%p145) target = $region12
      $region11: #{tpu_custom_call.1} parent=5 // pred_region
        %s149 = ssub.s32 %s15, 1
        // Predicated region
        $region13: #{tpu_custom_call.1} parent=11 // pred_check
          %p150 = pneg %p36
        $region14: #{tpu_custom_call.1} parent=11 // pred_check_branch
          %152 = sbr.rel (%p150) target = $region16
        $region15: #{tpu_custom_call.1} parent=11 // pred_region
          %154 = vsyncadd [#allocation3], 0
          %s155 = sshll.u32 %s0, 4
          %s156 = int_to_ptr.hbm [resolvable:$true] %s155
          %s157 = sshll.u32 [#allocation2], 4
          %s158 = int_to_ptr.vmem [resolvable:$true] %s157
          %163 = dma.hbm_to_vmem [thread:$0]  %s156, 256, %s158, [#allocation3], 128, 128, 8
        $region16: #{tpu_custom_call.1} parent=11 // pred_fallthru
          _
        // Predicated region
        $region17: #{tpu_custom_call.1} parent=11 // pred_check
          %p164 = pneg %p57
        $region18: #{tpu_custom_call.1} parent=11 // pred_check_branch
          %166 = sbr.rel (%p164) target = $region20
        $region19: #{tpu_custom_call.1} parent=11 // pred_region
          %168 = vsyncadd [#allocation6], 0
          %s169 = sshll.u32 %s1, 4
          %s170 = int_to_ptr.hbm [resolvable:$true] %s169
          %s171 = sshll.u32 [#allocation5], 4
          %s172 = int_to_ptr.vmem [resolvable:$true] %s171
          %177 = dma.hbm_to_vmem [thread:$0]  %s170, 256, %s172, [#allocation6], 128, 128, 8
        $region20: #{tpu_custom_call.1} parent=11 // pred_fallthru
          _
      $region12: #{tpu_custom_call.1} parent=5 // pred_fallthru
        _
      %p178 = scmp.lt.s32.totalorder %s15, 2
      // Predicated region
      $region21: #{tpu_custom_call.1} parent=5 // pred_check
        %p179 = pneg %p178
      $region22: #{tpu_custom_call.1} parent=5 // pred_check_branch
        %181 = sbr.rel (%p179) target = $region24
      $region23: #{tpu_custom_call.1} parent=5 // pred_region
        // Predicated region
        $region25: #{tpu_custom_call.1} parent=23 // pred_check
          %p182 = pneg %p77
        $region26: #{tpu_custom_call.1} parent=23 // pred_check_branch
          %184 = sbr.rel (%p182) target = $region28
        $region27: #{tpu_custom_call.1} parent=23 // pred_region
          %s185 = sand.u32 %s15, 1
          %s186 = scalar_lea.sflag [#allocation3], %s185
          %s187 = sand.u32 %s67, 1
          %s188 = smul.addr %s187, 48
          %s189 = scalar_lea.vmem [#allocation7], %s188
          %s190 = smul.u32 3, %s15
          %192 = vsyncadd %s186, 0
          %s193 = smul.addr %s190, 2
          %s194 = smul.addr %s193, 8
          %s195 = scalar_lea.hbm %s2, %s194
          %s196 = sshll.u32 %s195, 4
          %s197 = int_to_ptr.hbm [resolvable:$true] %s196
          %s198 = sshll.u32 %s189, 4
          %s199 = int_to_ptr.vmem [resolvable:$true] %s198
          %204 = dma.hbm_to_vmem [thread:$0]  %s197, 768, %s199, %s186, 128, 128, 8
        $region28: #{tpu_custom_call.1} parent=23 // pred_fallthru
          _
        // Predicated region
        $region29: #{tpu_custom_call.1} parent=23 // pred_check
          %p205 = pneg %p103
        $region30: #{tpu_custom_call.1} parent=23 // pred_check_branch
          %207 = sbr.rel (%p205) target = $region32
        $region31: #{tpu_custom_call.1} parent=23 // pred_region
          %s208 = sand.u32 %s15, 1
          %s209 = scalar_lea.sflag [#allocation3], %s208
          %s210 = sand.u32 %s93, 1
          %s211 = smul.addr %s210, 48
          %s212 = scalar_lea.vmem [#allocation8], %s211
          %s213 = smul.u32 3, %s15
          %215 = vsyncadd %s209, 0
          %s216 = smul.addr %s213, 2
          %s217 = smul.addr %s216, 8
          %s218 = scalar_lea.hbm %s3, %s217
          %s219 = sshll.u32 %s218, 4
          %s220 = int_to_ptr.hbm [resolvable:$true] %s219
          %s221 = sshll.u32 %s212, 4
          %s222 = int_to_ptr.vmem [resolvable:$true] %s221
          %227 = dma.hbm_to_vmem [thread:$0]  %s220, 768, %s222, %s209, 128, 128, 8
        $region32: #{tpu_custom_call.1} parent=23 // pred_fallthru
          _
      $region24: #{tpu_custom_call.1} parent=5 // pred_fallthru
        _
      %p228 = scmp.le.s32.totalorder 1, %s15
      %p229 = scmp.lt.s32.totalorder %s15, 3
      %p230 = pnand %p228, %p229
      %p231 = pneg %p230
      // Predicated region
      $region33: #{tpu_custom_call.1} parent=5 // pred_check
        _
      $region34: #{tpu_custom_call.1} parent=5 // pred_check_branch
        %233 = sbr.rel (%p230) target = $region36
      $region35: #{tpu_custom_call.1} parent=5 // pred_region
        %s234 = ssub.s32 %s15, 1
        // Predicated region
        $region37: #{tpu_custom_call.1} parent=35 // pred_check
          %p235 = pneg %p36
        $region38: #{tpu_custom_call.1} parent=35 // pred_check_branch
          %237 = sbr.rel (%p235) target = $region40
        $region39: #{tpu_custom_call.1} parent=35 // pred_region
          %239 = dma.done [#allocation3], 256
        $region40: #{tpu_custom_call.1} parent=35 // pred_fallthru
          _
        // Predicated region
        $region41: #{tpu_custom_call.1} parent=35 // pred_check
          %p240 = pneg %p57
        $region42: #{tpu_custom_call.1} parent=35 // pred_check_branch
          %242 = sbr.rel (%p240) target = $region44
        $region43: #{tpu_custom_call.1} parent=35 // pred_region
          %244 = dma.done [#allocation6], 256
        $region44: #{tpu_custom_call.1} parent=35 // pred_fallthru
          _
        %s245 = sand.u32 %s20, 1
        %s246 = scalar_lea.sflag [#allocation3], %s245
        %s247 = sand.u32 %s70, 1
        %s248 = smul.addr %s247, 48
        %s249 = scalar_lea.vmem [#allocation7], %s248
        // Predicated region
        $region45: #{tpu_custom_call.1} parent=35 // pred_check
          %p250 = pneg %p83
        $region46: #{tpu_custom_call.1} parent=35 // pred_check_branch
          %252 = sbr.rel (%p250) target = $region48
        $region47: #{tpu_custom_call.1} parent=35 // pred_region
          %254 = dma.done %s246, 768
        $region48: #{tpu_custom_call.1} parent=35 // pred_fallthru
          _
        %s255 = sand.u32 %s20, 1
        %s256 = scalar_lea.sflag [#allocation3], %s255
        %s257 = sand.u32 %s96, 1
        %s258 = smul.addr %s257, 48
        %s259 = scalar_lea.vmem [#allocation8], %s258
        // Predicated region
        $region49: #{tpu_custom_call.1} parent=35 // pred_check
          %p260 = pneg %p109
        $region50: #{tpu_custom_call.1} parent=35 // pred_check_branch
          %262 = sbr.rel (%p260) target = $region52
        $region51: #{tpu_custom_call.1} parent=35 // pred_region
          %264 = dma.done %s256, 768
        $region52: #{tpu_custom_call.1} parent=35 // pred_fallthru
          _
        %p265 = pneg %p36
        %p266 = pneg %p33
        %p267 = pneg %p57
        %p268 = pneg %p54
        %s269 = sand.u32 %s20, 1
        %s270 = scalar_lea.sflag [#allocation3], %s269
        %s271 = sand.u32 %s70, 1
        %s272 = smul.addr %s271, 48
        %s273 = scalar_lea.vmem [#allocation7], %s272
        %p274 = pneg %p83
        %p275 = pneg %p80
        %s276 = sand.u32 %s20, 1
        %s277 = scalar_lea.sflag [#allocation3], %s276
        %s278 = sand.u32 %s96, 1
        %s279 = smul.addr %s278, 48
        %s280 = scalar_lea.vmem [#allocation8], %s279
        %p281 = pneg %p109
        %p282 = pneg %p106
        %p283 = pneg %p135
        %p284 = pneg %p132
        %s285 = sand.u32 %s122, 1
        %s286 = scalar_lea.sflag [#allocation4], %s285
        %s287 = sand.u32 %s122, 1
        %s288 = scalar_lea.vmem [#allocation9], %s287
        %s289 = smul.u32 3, %s20
        %s290 = smul.u32 3, %s20
        %v291 = vld [vmem:[#allocation2] sm:$0xff]
        %v292 = vld [vmem:[#allocation2 + $0x8] sm:$0xff]
        %v293 = vld [vmem:[#allocation5] sm:$0xff]
        %v294 = vld [vmem:[#allocation5 + $0x8] sm:$0xff]
        %v295 = vld [vmem:[%s249] sm:$0xff]
        %v296 = vld [vmem:[%s249 + $0x8] sm:$0xff]
        %v297 = vld [vmem:[%s259] sm:$0xff]
        %v298 = vld [vmem:[%s259 + $0x8] sm:$0xff]
        %vm299 = vcmask 130048
        %v301 = vsel %vm299, %v291, 0
        %v304 = vsel %vm299, %v292, 0
        %306 = vmatpush.msra.mxu0 0.0
        %307 = vmatpush.msra.mxu0 0.0
        %308 = vmatpush.msra.mxu0 0.0
        %309 = vmatpush.msra.mxu0 0.0
        %310 = vmatpush.msra.mxu0 0.0
        %311 = vmatpush.msra.mxu0 0.0
        %312 = vmatpush.msra.mxu0 0.0
        %313 = vmatpush.msra.mxu0 0.0
        %314 = vmatpush.msra.mxu0 0.0
        %315 = vmatpush.msra.mxu0 0.0
        %316 = vmatpush.msra.mxu0 0.0
        %317 = vmatpush.msra.mxu0 0.0
        %318 = vmatpush.msra.mxu0 0.0
        %319 = vmatpush.msra.mxu0 0.0
        %320 = vmatpush.msra.mxu0 %v296
        %321 = vmatpush.msra.mxu0 %v295
        %322 = vmatmul.f32.gmra.mxu0 %v301
        %v323 = vpop.f32.mrf.mxu0
        %v324 = vadd.f32 0.0, %v323
        %325 = vmatmul.f32.gmra.mxu0 %v304
        %v326 = vpop.f32.mrf.mxu0
        %v327 = vadd.f32 0.0, %v326
        %328 = vdwg.mxu0
        %v330 = vsel %vm299, %v324, 0
        %v333 = vsel %vm299, %v327, 0
        %335 = vmatpush.msra.mxu0 0.0
        %336 = vmatpush.msra.mxu0 0.0
        %337 = vmatpush.msra.mxu0 0.0
        %338 = vmatpush.msra.mxu0 0.0
        %339 = vmatpush.msra.mxu0 0.0
        %340 = vmatpush.msra.mxu0 0.0
        %341 = vmatpush.msra.mxu0 0.0
        %342 = vmatpush.msra.mxu0 0.0
        %343 = vmatpush.msra.mxu0 0.0
        %344 = vmatpush.msra.mxu0 0.0
        %345 = vmatpush.msra.mxu0 0.0
        %346 = vmatpush.msra.mxu0 0.0
        %347 = vmatpush.msra.mxu0 0.0
        %348 = vmatpush.msra.mxu0 0.0
        %349 = vmatpush.msra.mxu0 %v294
        %350 = vmatpush.msra.mxu0 %v293
        %351 = vmatmul.f32.gmra.mxu0 %v330
        %v352 = vpop.f32.mrf.mxu0
        %v353 = vadd.f32 0.0, %v352
        %354 = vmatmul.f32.gmra.mxu0 %v333
        %v355 = vpop.f32.mrf.mxu0
        %v356 = vadd.f32 0.0, %v355
        %357 = vdwg.mxu0
        %358 = vmatpush.msra.mxu0 0.0
        %359 = vmatpush.msra.mxu0 0.0
        %360 = vmatpush.msra.mxu0 0.0
        %361 = vmatpush.msra.mxu0 0.0
        %362 = vmatpush.msra.mxu0 0.0
        %363 = vmatpush.msra.mxu0 0.0
        %364 = vmatpush.msra.mxu0 0.0
        %365 = vmatpush.msra.mxu0 0.0
        %366 = vmatpush.msra.mxu0 0.0
        %367 = vmatpush.msra.mxu0 0.0
        %368 = vmatpush.msra.mxu0 0.0
        %369 = vmatpush.msra.mxu0 0.0
        %370 = vmatpush.msra.mxu0 0.0
        %371 = vmatpush.msra.mxu0 0.0
        %372 = vmatpush.msra.mxu0 %v298
        %373 = vmatpush.msra.mxu0 %v297
        %374 = vmatmul.f32.gmra.mxu0 %v301
        %v375 = vpop.f32.mrf.mxu0
        %v376 = vadd.f32 0.0, %v375
        %377 = vmatmul.f32.gmra.mxu0 %v304
        %v378 = vpop.f32.mrf.mxu0
        %v379 = vadd.f32 0.0, %v378
        %380 = vdwg.mxu0
        %v382 = vsel %vm299, %v376, 0
        %v385 = vsel %vm299, %v379, 0
        %387 = vmatpush.msra.mxu0 0.0
        %388 = vmatpush.msra.mxu0 0.0
        %389 = vmatpush.msra.mxu0 0.0
        %390 = vmatpush.msra.mxu0 0.0
        %391 = vmatpush.msra.mxu0 0.0
        %392 = vmatpush.msra.mxu0 0.0
        %393 = vmatpush.msra.mxu0 0.0
        %394 = vmatpush.msra.mxu0 0.0
        %395 = vmatpush.msra.mxu0 0.0
        %396 = vmatpush.msra.mxu0 0.0
        %397 = vmatpush.msra.mxu0 0.0
        %398 = vmatpush.msra.mxu0 0.0
        %399 = vmatpush.msra.mxu0 0.0
        %400 = vmatpush.msra.mxu0 0.0
        %401 = vmatpush.msra.mxu0 %v294
        %402 = vmatpush.msra.mxu0 %v293
        %403 = vmatmul.f32.gmra.mxu0 %v382
        %v404 = vpop.f32.mrf.mxu0
        %v405 = vadd.f32 0.0, %v404
        %406 = vmatmul.f32.gmra.mxu0 %v385
        %v407 = vpop.f32.mrf.mxu0
        %v408 = vadd.f32 0.0, %v407
        %409 = vdwg.mxu0
        %v410 = vmul.f32 %v295, %v295
        %v411 = vmul.f32 %v296, %v296
        %412 = vmatpush.msra.mxu0 0.0
        %413 = vmatpush.msra.mxu0 0.0
        %414 = vmatpush.msra.mxu0 0.0
        %415 = vmatpush.msra.mxu0 0.0
        %416 = vmatpush.msra.mxu0 0.0
        %417 = vmatpush.msra.mxu0 0.0
        %418 = vmatpush.msra.mxu0 0.0
        %419 = vmatpush.msra.mxu0 0.0
        %420 = vmatpush.msra.mxu0 0.0
        %421 = vmatpush.msra.mxu0 0.0
        %422 = vmatpush.msra.mxu0 0.0
        %423 = vmatpush.msra.mxu0 0.0
        %424 = vmatpush.msra.mxu0 0.0
        %425 = vmatpush.msra.mxu0 0.0
        %426 = vmatpush.msra.mxu0 %v411
        %427 = vmatpush.msra.mxu0 %v410
        %428 = vmatmul.f32.gmra.mxu0 %v301
        %v429 = vpop.f32.mrf.mxu0
        %v430 = vadd.f32 0.0, %v429
        %431 = vmatmul.f32.gmra.mxu0 %v304
        %v432 = vpop.f32.mrf.mxu0
        %v433 = vadd.f32 0.0, %v432
        %434 = vdwg.mxu0
        %v436 = vsel %vm299, %v430, 0
        %v439 = vsel %vm299, %v433, 0
        %441 = vmatpush.msra.mxu0 0.0
        %442 = vmatpush.msra.mxu0 0.0
        %443 = vmatpush.msra.mxu0 0.0
        %444 = vmatpush.msra.mxu0 0.0
        %445 = vmatpush.msra.mxu0 0.0
        %446 = vmatpush.msra.mxu0 0.0
        %447 = vmatpush.msra.mxu0 0.0
        %448 = vmatpush.msra.mxu0 0.0
        %449 = vmatpush.msra.mxu0 0.0
        %450 = vmatpush.msra.mxu0 0.0
        %451 = vmatpush.msra.mxu0 0.0
        %452 = vmatpush.msra.mxu0 0.0
        %453 = vmatpush.msra.mxu0 0.0
        %454 = vmatpush.msra.mxu0 0.0
        %455 = vmatpush.msra.mxu0 %v294
        %456 = vmatpush.msra.mxu0 %v293
        %457 = vmatmul.f32.gmra.mxu0 %v436
        %v458 = vpop.f32.mrf.mxu0
        %v459 = vadd.f32 0.0, %v458
        %460 = vmatmul.f32.gmra.mxu0 %v439
        %v461 = vpop.f32.mrf.mxu0
        %v462 = vadd.f32 0.0, %v461
        %463 = vdwg.mxu0
        %v464 = vmul.f32 %v297, %v297
        %v465 = vmul.f32 %v298, %v298
        %466 = vmatpush.msra.mxu0 0.0
        %467 = vmatpush.msra.mxu0 0.0
        %468 = vmatpush.msra.mxu0 0.0
        %469 = vmatpush.msra.mxu0 0.0
        %470 = vmatpush.msra.mxu0 0.0
        %471 = vmatpush.msra.mxu0 0.0
        %472 = vmatpush.msra.mxu0 0.0
        %473 = vmatpush.msra.mxu0 0.0
        %474 = vmatpush.msra.mxu0 0.0
        %475 = vmatpush.msra.mxu0 0.0
        %476 = vmatpush.msra.mxu0 0.0
        %477 = vmatpush.msra.mxu0 0.0
        %478 = vmatpush.msra.mxu0 0.0
        %479 = vmatpush.msra.mxu0 0.0
        %480 = vmatpush.msra.mxu0 %v465
        %481 = vmatpush.msra.mxu0 %v464
        %482 = vmatmul.f32.gmra.mxu0 %v301
        %v483 = vpop.f32.mrf.mxu0
        %v484 = vadd.f32 0.0, %v483
        %485 = vmatmul.f32.gmra.mxu0 %v304
        %v486 = vpop.f32.mrf.mxu0
        %v487 = vadd.f32 0.0, %v486
        %488 = vdwg.mxu0
        %v490 = vsel %vm299, %v484, 0
        %v493 = vsel %vm299, %v487, 0
        %495 = vmatpush.msra.mxu0 0.0
        %496 = vmatpush.msra.mxu0 0.0
        %497 = vmatpush.msra.mxu0 0.0
        %498 = vmatpush.msra.mxu0 0.0
        %499 = vmatpush.msra.mxu0 0.0
        %500 = vmatpush.msra.mxu0 0.0
        %501 = vmatpush.msra.mxu0 0.0
        %502 = vmatpush.msra.mxu0 0.0
        %503 = vmatpush.msra.mxu0 0.0
        %504 = vmatpush.msra.mxu0 0.0
        %505 = vmatpush.msra.mxu0 0.0
        %506 = vmatpush.msra.mxu0 0.0
        %507 = vmatpush.msra.mxu0 0.0
        %508 = vmatpush.msra.mxu0 0.0
        %509 = vmatpush.msra.mxu0 %v294
        %510 = vmatpush.msra.mxu0 %v293
        %511 = vmatmul.f32.gmra.mxu0 %v490
        %v512 = vpop.f32.mrf.mxu0
        %v513 = vadd.f32 0.0, %v512
        %514 = vmatmul.f32.gmra.mxu0 %v493
        %v515 = vpop.f32.mrf.mxu0
        %v516 = vadd.f32 0.0, %v515
        %517 = vdwg.mxu0
        %v518 = vmul.f32 %v295, %v297
        %v519 = vmul.f32 %v296, %v298
        %520 = vmatpush.msra.mxu0 0.0
        %521 = vmatpush.msra.mxu0 0.0
        %522 = vmatpush.msra.mxu0 0.0
        %523 = vmatpush.msra.mxu0 0.0
        %524 = vmatpush.msra.mxu0 0.0
        %525 = vmatpush.msra.mxu0 0.0
        %526 = vmatpush.msra.mxu0 0.0
        %527 = vmatpush.msra.mxu0 0.0
        %528 = vmatpush.msra.mxu0 0.0
        %529 = vmatpush.msra.mxu0 0.0
        %530 = vmatpush.msra.mxu0 0.0
        %531 = vmatpush.msra.mxu0 0.0
        %532 = vmatpush.msra.mxu0 0.0
        %533 = vmatpush.msra.mxu0 0.0
        %534 = vmatpush.msra.mxu0 %v519
        %535 = vmatpush.msra.mxu0 %v518
        %536 = vmatmul.f32.gmra.mxu0 %v301
        %v537 = vpop.f32.mrf.mxu0
        %v538 = vadd.f32 0.0, %v537
        %539 = vmatmul.f32.gmra.mxu0 %v304
        %v540 = vpop.f32.mrf.mxu0
        %v541 = vadd.f32 0.0, %v540
        %542 = vdwg.mxu0
        %v544 = vsel %vm299, %v538, 0
        %v547 = vsel %vm299, %v541, 0
        %549 = vmatpush.msra.mxu0 0.0
        %550 = vmatpush.msra.mxu0 0.0
        %551 = vmatpush.msra.mxu0 0.0
        %552 = vmatpush.msra.mxu0 0.0
        %553 = vmatpush.msra.mxu0 0.0
        %554 = vmatpush.msra.mxu0 0.0
        %555 = vmatpush.msra.mxu0 0.0
        %556 = vmatpush.msra.mxu0 0.0
        %557 = vmatpush.msra.mxu0 0.0
        %558 = vmatpush.msra.mxu0 0.0
        %559 = vmatpush.msra.mxu0 0.0
        %560 = vmatpush.msra.mxu0 0.0
        %561 = vmatpush.msra.mxu0 0.0
        %562 = vmatpush.msra.mxu0 0.0
        %563 = vmatpush.msra.mxu0 %v294
        %564 = vmatpush.msra.mxu0 %v293
        %565 = vmatmul.f32.gmra.mxu0 %v544
        %v566 = vpop.f32.mrf.mxu0
        %v567 = vadd.f32 0.0, %v566
        %568 = vmatmul.f32.gmra.mxu0 %v547
        %v569 = vpop.f32.mrf.mxu0
        %v570 = vadd.f32 0.0, %v569
        %571 = vdwg.mxu0
        %v572 = vmul.f32 %v353, %v353
        %v573 = vmul.f32 %v356, %v356
        %v574 = vmul.f32 %v405, %v405
        %v575 = vmul.f32 %v408, %v408
        %v576 = vmul.f32 %v353, %v405
        %v577 = vmul.f32 %v356, %v408
        %v578 = vsub.f32 %v459, %v572
        %v579 = vsub.f32 %v462, %v573
        %v580 = vsub.f32 %v513, %v574
        %v581 = vsub.f32 %v516, %v575
        %v582 = vsub.f32 %v567, %v576
        %v583 = vsub.f32 %v570, %v577
        %v584 = vmul.f32 %v576, 2.0
        %v585 = vmul.f32 %v577, 2.0
        %v586 = vadd.f32 %v584, 0.0001
        %v587 = vadd.f32 %v585, 0.0001
        %v588 = vmul.f32 %v582, 2.0
        %v589 = vmul.f32 %v583, 2.0
        %v590 = vadd.f32 %v588, 0.0009
        %v591 = vadd.f32 %v589, 0.0009
        %v592 = vmul.f32 %v586, %v590
        %v593 = vmul.f32 %v587, %v591
        %v594 = vadd.f32 %v572, %v574
        %v595 = vadd.f32 %v573, %v575
        %v596 = vadd.f32 %v594, 0.0001
        %v597 = vadd.f32 %v595, 0.0001
        %v598 = vadd.f32 %v578, %v580
        %v599 = vadd.f32 %v579, %v581
        %v600 = vadd.f32 %v598, 0.0009
        %v601 = vadd.f32 %v599, 0.0009
        %v602 = vmul.f32 %v596, %v600
        %v603 = vmul.f32 %v597, %v601
        %v604 = vrcp.pop %v602
        %v605 = vmul.f32 %v602, %v604
        %v606 = vsub.f32 1.0, %v605
        %v607 = vmul.f32 %v604, %v606
        %v608 = vadd.f32 %v604, %v607
        %vm609 = vweird.f32 %v602
        %vm610 = vweird.f32 %v604
        %vm611 = vmor %vm609, %vm610
        %v612 = vsel %vm611, %v604, %v608
        %v613 = vand.u32 2147483647, %v602
        %vm614 = vcmp.eq.f32.partialorder %v613, 8.507059e+37
        %v615 = vand.u32 %v602, 2147483648
        %v616 = vor.u32 1.1754944e-38, %v615
        %v617 = vsel %vm614, %v616, %v612
        %v618 = vrcp.pop %v603
        %v619 = vmul.f32 %v603, %v618
        %v620 = vsub.f32 1.0, %v619
        %v621 = vmul.f32 %v618, %v620
        %v622 = vadd.f32 %v618, %v621
        %vm623 = vweird.f32 %v603
        %vm624 = vweird.f32 %v618
        %vm625 = vmor %vm623, %vm624
        %v626 = vsel %vm625, %v618, %v622
        %v627 = vand.u32 2147483647, %v603
        %vm628 = vcmp.eq.f32.partialorder %v627, 8.507059e+37
        %v629 = vand.u32 %v603, 2147483648
        %v630 = vor.u32 1.1754944e-38, %v629
        %v631 = vsel %vm628, %v630, %v626
        %v632 = vmul.f32 %v592, %v617
        %v633 = vmul.f32 %v593, %v631
        %v634 = vsel %vm299, %v632, 0.0
        %v635 = vsel %vm299, %v633, 0.0
        %v636 = vadd.f32 %v634, %v635
        %637 = vadd.xlane.f32.xlu0 %v636
        %v638 = vpop.xlane.xlu0 %637
        %v639 = vrot.slane %v638, 4
        %v640 = vadd.f32 %v638, %v639
        %v641 = vrot.slane %v640, 2
        %v642 = vadd.f32 %v640, %v641
        %v643 = vrot.slane %v642, 1
        %v644 = vadd.f32 %v642, %v643
        %s645 = vtos %v644
        %s646 = sadd.f32 %s645, 0.0
        %s647 = scalar_lea.vmem %s249, 16 [#allocation7]
        %v648 = vld [vmem:[%s647] sm:$0xff]
        %v649 = vld [vmem:[%s647 + $0x8] sm:$0xff]
        %s650 = scalar_lea.vmem %s259, 16 [#allocation8]
        %v651 = vld [vmem:[%s650] sm:$0xff]
        %v652 = vld [vmem:[%s650 + $0x8] sm:$0xff]
        %653 = vmatpush.msra.mxu0 0.0
        %654 = vmatpush.msra.mxu0 0.0
        %655 = vmatpush.msra.mxu0 0.0
        %656 = vmatpush.msra.mxu0 0.0
        %657 = vmatpush.msra.mxu0 0.0
        %658 = vmatpush.msra.mxu0 0.0
        %659 = vmatpush.msra.mxu0 0.0
        %660 = vmatpush.msra.mxu0 0.0
        %661 = vmatpush.msra.mxu0 0.0
        %662 = vmatpush.msra.mxu0 0.0
        %663 = vmatpush.msra.mxu0 0.0
        %664 = vmatpush.msra.mxu0 0.0
        %665 = vmatpush.msra.mxu0 0.0
        %666 = vmatpush.msra.mxu0 0.0
        %667 = vmatpush.msra.mxu0 %v649
        %668 = vmatpush.msra.mxu0 %v648
        %669 = vmatmul.f32.gmra.mxu0 %v301
        %v670 = vpop.f32.mrf.mxu0
        %v671 = vadd.f32 0.0, %v670
        %672 = vmatmul.f32.gmra.mxu0 %v304
        %v673 = vpop.f32.mrf.mxu0
        %v674 = vadd.f32 0.0, %v673
        %675 = vdwg.mxu0
        %v677 = vsel %vm299, %v671, 0
        %v680 = vsel %vm299, %v674, 0
        %682 = vmatpush.msra.mxu0 0.0
        %683 = vmatpush.msra.mxu0 0.0
        %684 = vmatpush.msra.mxu0 0.0
        %685 = vmatpush.msra.mxu0 0.0
        %686 = vmatpush.msra.mxu0 0.0
        %687 = vmatpush.msra.mxu0 0.0
        %688 = vmatpush.msra.mxu0 0.0
        %689 = vmatpush.msra.mxu0 0.0
        %690 = vmatpush.msra.mxu0 0.0
        %691 = vmatpush.msra.mxu0 0.0
        %692 = vmatpush.msra.mxu0 0.0
        %693 = vmatpush.msra.mxu0 0.0
        %694 = vmatpush.msra.mxu0 0.0
        %695 = vmatpush.msra.mxu0 0.0
        %696 = vmatpush.msra.mxu0 %v294
        %697 = vmatpush.msra.mxu0 %v293
        %698 = vmatmul.f32.gmra.mxu0 %v677
        %v699 = vpop.f32.mrf.mxu0
        %v700 = vadd.f32 0.0, %v699
        %701 = vmatmul.f32.gmra.mxu0 %v680
        %v702 = vpop.f32.mrf.mxu0
        %v703 = vadd.f32 0.0, %v702
        %704 = vdwg.mxu0
        %705 = vmatpush.msra.mxu0 0.0
        %706 = vmatpush.msra.mxu0 0.0
        %707 = vmatpush.msra.mxu0 0.0
        %708 = vmatpush.msra.mxu0 0.0
        %709 = vmatpush.msra.mxu0 0.0
        %710 = vmatpush.msra.mxu0 0.0
        %711 = vmatpush.msra.mxu0 0.0
        %712 = vmatpush.msra.mxu0 0.0
        %713 = vmatpush.msra.mxu0 0.0
        %714 = vmatpush.msra.mxu0 0.0
        %715 = vmatpush.msra.mxu0 0.0
        %716 = vmatpush.msra.mxu0 0.0
        %717 = vmatpush.msra.mxu0 0.0
        %718 = vmatpush.msra.mxu0 0.0
        %719 = vmatpush.msra.mxu0 %v652
        %720 = vmatpush.msra.mxu0 %v651
        %721 = vmatmul.f32.gmra.mxu0 %v301
        %v722 = vpop.f32.mrf.mxu0
        %v723 = vadd.f32 0.0, %v722
        %724 = vmatmul.f32.gmra.mxu0 %v304
        %v725 = vpop.f32.mrf.mxu0
        %v726 = vadd.f32 0.0, %v725
        %727 = vdwg.mxu0
        %v729 = vsel %vm299, %v723, 0
        %v732 = vsel %vm299, %v726, 0
        %734 = vmatpush.msra.mxu0 0.0
        %735 = vmatpush.msra.mxu0 0.0
        %736 = vmatpush.msra.mxu0 0.0
        %737 = vmatpush.msra.mxu0 0.0
        %738 = vmatpush.msra.mxu0 0.0
        %739 = vmatpush.msra.mxu0 0.0
        %740 = vmatpush.msra.mxu0 0.0
        %741 = vmatpush.msra.mxu0 0.0
        %742 = vmatpush.msra.mxu0 0.0
        %743 = vmatpush.msra.mxu0 0.0
        %744 = vmatpush.msra.mxu0 0.0
        %745 = vmatpush.msra.mxu0 0.0
        %746 = vmatpush.msra.mxu0 0.0
        %747 = vmatpush.msra.mxu0 0.0
        %748 = vmatpush.msra.mxu0 %v294
        %749 = vmatpush.msra.mxu0 %v293
        %750 = vmatmul.f32.gmra.mxu0 %v729
        %v751 = vpop.f32.mrf.mxu0
        %v752 = vadd.f32 0.0, %v751
        %753 = vmatmul.f32.gmra.mxu0 %v732
        %v754 = vpop.f32.mrf.mxu0
        %v755 = vadd.f32 0.0, %v754
        %756 = vdwg.mxu0
        %v757 = vmul.f32 %v648, %v648
        %v758 = vmul.f32 %v649, %v649
        %759 = vmatpush.msra.mxu0 0.0
        %760 = vmatpush.msra.mxu0 0.0
        %761 = vmatpush.msra.mxu0 0.0
        %762 = vmatpush.msra.mxu0 0.0
        %763 = vmatpush.msra.mxu0 0.0
        %764 = vmatpush.msra.mxu0 0.0
        %765 = vmatpush.msra.mxu0 0.0
        %766 = vmatpush.msra.mxu0 0.0
        %767 = vmatpush.msra.mxu0 0.0
        %768 = vmatpush.msra.mxu0 0.0
        %769 = vmatpush.msra.mxu0 0.0
        %770 = vmatpush.msra.mxu0 0.0
        %771 = vmatpush.msra.mxu0 0.0
        %772 = vmatpush.msra.mxu0 0.0
        %773 = vmatpush.msra.mxu0 %v758
        %774 = vmatpush.msra.mxu0 %v757
        %775 = vmatmul.f32.gmra.mxu0 %v301
        %v776 = vpop.f32.mrf.mxu0
        %v777 = vadd.f32 0.0, %v776
        %778 = vmatmul.f32.gmra.mxu0 %v304
        %v779 = vpop.f32.mrf.mxu0
        %v780 = vadd.f32 0.0, %v779
        %781 = vdwg.mxu0
        %v783 = vsel %vm299, %v777, 0
        %v786 = vsel %vm299, %v780, 0
        %788 = vmatpush.msra.mxu0 0.0
        %789 = vmatpush.msra.mxu0 0.0
        %790 = vmatpush.msra.mxu0 0.0
        %791 = vmatpush.msra.mxu0 0.0
        %792 = vmatpush.msra.mxu0 0.0
        %793 = vmatpush.msra.mxu0 0.0
        %794 = vmatpush.msra.mxu0 0.0
        %795 = vmatpush.msra.mxu0 0.0
        %796 = vmatpush.msra.mxu0 0.0
        %797 = vmatpush.msra.mxu0 0.0
        %798 = vmatpush.msra.mxu0 0.0
        %799 = vmatpush.msra.mxu0 0.0
        %800 = vmatpush.msra.mxu0 0.0
        %801 = vmatpush.msra.mxu0 0.0
        %802 = vmatpush.msra.mxu0 %v294
        %803 = vmatpush.msra.mxu0 %v293
        %804 = vmatmul.f32.gmra.mxu0 %v783
        %v805 = vpop.f32.mrf.mxu0
        %v806 = vadd.f32 0.0, %v805
        %807 = vmatmul.f32.gmra.mxu0 %v786
        %v808 = vpop.f32.mrf.mxu0
        %v809 = vadd.f32 0.0, %v808
        %810 = vdwg.mxu0
        %v811 = vmul.f32 %v651, %v651
        %v812 = vmul.f32 %v652, %v652
        %813 = vmatpush.msra.mxu0 0.0
        %814 = vmatpush.msra.mxu0 0.0
        %815 = vmatpush.msra.mxu0 0.0
        %816 = vmatpush.msra.mxu0 0.0
        %817 = vmatpush.msra.mxu0 0.0
        %818 = vmatpush.msra.mxu0 0.0
        %819 = vmatpush.msra.mxu0 0.0
        %820 = vmatpush.msra.mxu0 0.0
        %821 = vmatpush.msra.mxu0 0.0
        %822 = vmatpush.msra.mxu0 0.0
        %823 = vmatpush.msra.mxu0 0.0
        %824 = vmatpush.msra.mxu0 0.0
        %825 = vmatpush.msra.mxu0 0.0
        %826 = vmatpush.msra.mxu0 0.0
        %827 = vmatpush.msra.mxu0 %v812
        %828 = vmatpush.msra.mxu0 %v811
        %829 = vmatmul.f32.gmra.mxu0 %v301
        %v830 = vpop.f32.mrf.mxu0
        %v831 = vadd.f32 0.0, %v830
        %832 = vmatmul.f32.gmra.mxu0 %v304
        %v833 = vpop.f32.mrf.mxu0
        %v834 = vadd.f32 0.0, %v833
        %835 = vdwg.mxu0
        %v837 = vsel %vm299, %v831, 0
        %v840 = vsel %vm299, %v834, 0
        %842 = vmatpush.msra.mxu0 0.0
        %843 = vmatpush.msra.mxu0 0.0
        %844 = vmatpush.msra.mxu0 0.0
        %845 = vmatpush.msra.mxu0 0.0
        %846 = vmatpush.msra.mxu0 0.0
        %847 = vmatpush.msra.mxu0 0.0
        %848 = vmatpush.msra.mxu0 0.0
        %849 = vmatpush.msra.mxu0 0.0
        %850 = vmatpush.msra.mxu0 0.0
        %851 = vmatpush.msra.mxu0 0.0
        %852 = vmatpush.msra.mxu0 0.0
        %853 = vmatpush.msra.mxu0 0.0
        %854 = vmatpush.msra.mxu0 0.0
        %855 = vmatpush.msra.mxu0 0.0
        %856 = vmatpush.msra.mxu0 %v294
        %857 = vmatpush.msra.mxu0 %v293
        %858 = vmatmul.f32.gmra.mxu0 %v837
        %v859 = vpop.f32.mrf.mxu0
        %v860 = vadd.f32 0.0, %v859
        %861 = vmatmul.f32.gmra.mxu0 %v840
        %v862 = vpop.f32.mrf.mxu0
        %v863 = vadd.f32 0.0, %v862
        %864 = vdwg.mxu0
        %v865 = vmul.f32 %v648, %v651
        %v866 = vmul.f32 %v649, %v652
        %867 = vmatpush.msra.mxu0 0.0
        %868 = vmatpush.msra.mxu0 0.0
        %869 = vmatpush.msra.mxu0 0.0
        %870 = vmatpush.msra.mxu0 0.0
        %871 = vmatpush.msra.mxu0 0.0
        %872 = vmatpush.msra.mxu0 0.0
        %873 = vmatpush.msra.mxu0 0.0
        %874 = vmatpush.msra.mxu0 0.0
        %875 = vmatpush.msra.mxu0 0.0
        %876 = vmatpush.msra.mxu0 0.0
        %877 = vmatpush.msra.mxu0 0.0
        %878 = vmatpush.msra.mxu0 0.0
        %879 = vmatpush.msra.mxu0 0.0
        %880 = vmatpush.msra.mxu0 0.0
        %881 = vmatpush.msra.mxu0 %v866
        %882 = vmatpush.msra.mxu0 %v865
        %883 = vmatmul.f32.gmra.mxu0 %v301
        %v884 = vpop.f32.mrf.mxu0
        %v885 = vadd.f32 0.0, %v884
        %886 = vmatmul.f32.gmra.mxu0 %v304
        %v887 = vpop.f32.mrf.mxu0
        %v888 = vadd.f32 0.0, %v887
        %889 = vdwg.mxu0
        %v891 = vsel %vm299, %v885, 0
        %v894 = vsel %vm299, %v888, 0
        %896 = vmatpush.msra.mxu0 0.0
        %897 = vmatpush.msra.mxu0 0.0
        %898 = vmatpush.msra.mxu0 0.0
        %899 = vmatpush.msra.mxu0 0.0
        %900 = vmatpush.msra.mxu0 0.0
        %901 = vmatpush.msra.mxu0 0.0
        %902 = vmatpush.msra.mxu0 0.0
        %903 = vmatpush.msra.mxu0 0.0
        %904 = vmatpush.msra.mxu0 0.0
        %905 = vmatpush.msra.mxu0 0.0
        %906 = vmatpush.msra.mxu0 0.0
        %907 = vmatpush.msra.mxu0 0.0
        %908 = vmatpush.msra.mxu0 0.0
        %909 = vmatpush.msra.mxu0 0.0
        %910 = vmatpush.msra.mxu0 %v294
        %911 = vmatpush.msra.mxu0 %v293
        %912 = vmatmul.f32.gmra.mxu0 %v891
        %v913 = vpop.f32.mrf.mxu0
        %v914 = vadd.f32 0.0, %v913
        %915 = vmatmul.f32.gmra.mxu0 %v894
        %v916 = vpop.f32.mrf.mxu0
        %v917 = vadd.f32 0.0, %v916
        %918 = vdwg.mxu0
        %v919 = vmul.f32 %v700, %v700
        %v920 = vmul.f32 %v703, %v703
        %v921 = vmul.f32 %v752, %v752
        %v922 = vmul.f32 %v755, %v755
        %v923 = vmul.f32 %v700, %v752
        %v924 = vmul.f32 %v703, %v755
        %v925 = vsub.f32 %v806, %v919
        %v926 = vsub.f32 %v809, %v920
        %v927 = vsub.f32 %v860, %v921
        %v928 = vsub.f32 %v863, %v922
        %v929 = vsub.f32 %v914, %v923
        %v930 = vsub.f32 %v917, %v924
        %v931 = vmul.f32 %v923, 2.0
        %v932 = vmul.f32 %v924, 2.0
        %v933 = vadd.f32 %v931, 0.0001
        %v934 = vadd.f32 %v932, 0.0001
        %v935 = vmul.f32 %v929, 2.0
        %v936 = vmul.f32 %v930, 2.0
        %v937 = vadd.f32 %v935, 0.0009
        %v938 = vadd.f32 %v936, 0.0009
        %v939 = vmul.f32 %v933, %v937
        %v940 = vmul.f32 %v934, %v938
        %v941 = vadd.f32 %v919, %v921
        %v942 = vadd.f32 %v920, %v922
        %v943 = vadd.f32 %v941, 0.0001
        %v944 = vadd.f32 %v942, 0.0001
        %v945 = vadd.f32 %v925, %v927
        %v946 = vadd.f32 %v926, %v928
        %v947 = vadd.f32 %v945, 0.0009
        %v948 = vadd.f32 %v946, 0.0009
        %v949 = vmul.f32 %v943, %v947
        %v950 = vmul.f32 %v944, %v948
        %v951 = vrcp.pop %v949
        %v952 = vmul.f32 %v949, %v951
        %v953 = vsub.f32 1.0, %v952
        %v954 = vmul.f32 %v951, %v953
        %v955 = vadd.f32 %v951, %v954
        %vm956 = vweird.f32 %v949
        %vm957 = vweird.f32 %v951
        %vm958 = vmor %vm956, %vm957
        %v959 = vsel %vm958, %v951, %v955
        %v960 = vand.u32 2147483647, %v949
        %vm961 = vcmp.eq.f32.partialorder %v960, 8.507059e+37
        %v962 = vand.u32 %v949, 2147483648
        %v963 = vor.u32 1.1754944e-38, %v962
        %v964 = vsel %vm961, %v963, %v959
        %v965 = vrcp.pop %v950
        %v966 = vmul.f32 %v950, %v965
        %v967 = vsub.f32 1.0, %v966
        %v968 = vmul.f32 %v965, %v967
        %v969 = vadd.f32 %v965, %v968
        %vm970 = vweird.f32 %v950
        %vm971 = vweird.f32 %v965
        %vm972 = vmor %vm970, %vm971
        %v973 = vsel %vm972, %v965, %v969
        %v974 = vand.u32 2147483647, %v950
        %vm975 = vcmp.eq.f32.partialorder %v974, 8.507059e+37
        %v976 = vand.u32 %v950, 2147483648
        %v977 = vor.u32 1.1754944e-38, %v976
        %v978 = vsel %vm975, %v977, %v973
        %v979 = vmul.f32 %v939, %v964
        %v980 = vmul.f32 %v940, %v978
        %v981 = vsel %vm299, %v979, 0.0
        %v982 = vsel %vm299, %v980, 0.0
        %v983 = vadd.f32 %v981, %v982
        %984 = vadd.xlane.f32.xlu0 %v983
        %v985 = vpop.xlane.xlu0 %984
        %v986 = vrot.slane %v985, 4
        %v987 = vadd.f32 %v985, %v986
        %v988 = vrot.slane %v987, 2
        %v989 = vadd.f32 %v987, %v988
        %v990 = vrot.slane %v989, 1
        %v991 = vadd.f32 %v989, %v990
        %s992 = vtos %v991
        %s993 = sadd.f32 %s646, %s992
        %s994 = scalar_lea.vmem %s249, 32 [#allocation7]
        %v995 = vld [vmem:[%s994] sm:$0xff]
        %v996 = vld [vmem:[%s994 + $0x8] sm:$0xff]
        %s997 = scalar_lea.vmem %s259, 32 [#allocation8]
        %v998 = vld [vmem:[%s997] sm:$0xff]
        %v999 = vld [vmem:[%s997 + $0x8] sm:$0xff]
        %1000 = vmatpush.msra.mxu0 0.0
        %1001 = vmatpush.msra.mxu0 0.0
        %1002 = vmatpush.msra.mxu0 0.0
        %1003 = vmatpush.msra.mxu0 0.0
        %1004 = vmatpush.msra.mxu0 0.0
        %1005 = vmatpush.msra.mxu0 0.0
        %1006 = vmatpush.msra.mxu0 0.0
        %1007 = vmatpush.msra.mxu0 0.0
        %1008 = vmatpush.msra.mxu0 0.0
        %1009 = vmatpush.msra.mxu0 0.0
        %1010 = vmatpush.msra.mxu0 0.0
        %1011 = vmatpush.msra.mxu0 0.0
        %1012 = vmatpush.msra.mxu0 0.0
        %1013 = vmatpush.msra.mxu0 0.0
        %1014 = vmatpush.msra.mxu0 %v996
        %1015 = vmatpush.msra.mxu0 %v995
        %1016 = vmatmul.f32.gmra.mxu0 %v301
        %v1017 = vpop.f32.mrf.mxu0
        %v1018 = vadd.f32 0.0, %v1017
        %1019 = vmatmul.f32.gmra.mxu0 %v304
        %v1020 = vpop.f32.mrf.mxu0
        %v1021 = vadd.f32 0.0, %v1020
        %1022 = vdwg.mxu0
        %v1024 = vsel %vm299, %v1018, 0
        %v1027 = vsel %vm299, %v1021, 0
        %1029 = vmatpush.msra.mxu0 0.0
        %1030 = vmatpush.msra.mxu0 0.0
        %1031 = vmatpush.msra.mxu0 0.0
        %1032 = vmatpush.msra.mxu0 0.0
        %1033 = vmatpush.msra.mxu0 0.0
        %1034 = vmatpush.msra.mxu0 0.0
        %1035 = vmatpush.msra.mxu0 0.0
        %1036 = vmatpush.msra.mxu0 0.0
        %1037 = vmatpush.msra.mxu0 0.0
        %1038 = vmatpush.msra.mxu0 0.0
        %1039 = vmatpush.msra.mxu0 0.0
        %1040 = vmatpush.msra.mxu0 0.0
        %1041 = vmatpush.msra.mxu0 0.0
        %1042 = vmatpush.msra.mxu0 0.0
        %1043 = vmatpush.msra.mxu0 %v294
        %1044 = vmatpush.msra.mxu0 %v293
        %1045 = vmatmul.f32.gmra.mxu0 %v1024
        %v1046 = vpop.f32.mrf.mxu0
        %v1047 = vadd.f32 0.0, %v1046
        %1048 = vmatmul.f32.gmra.mxu0 %v1027
        %v1049 = vpop.f32.mrf.mxu0
        %v1050 = vadd.f32 0.0, %v1049
        %1051 = vdwg.mxu0
        %1052 = vmatpush.msra.mxu0 0.0
        %1053 = vmatpush.msra.mxu0 0.0
        %1054 = vmatpush.msra.mxu0 0.0
        %1055 = vmatpush.msra.mxu0 0.0
        %1056 = vmatpush.msra.mxu0 0.0
        %1057 = vmatpush.msra.mxu0 0.0
        %1058 = vmatpush.msra.mxu0 0.0
        %1059 = vmatpush.msra.mxu0 0.0
        %1060 = vmatpush.msra.mxu0 0.0
        %1061 = vmatpush.msra.mxu0 0.0
        %1062 = vmatpush.msra.mxu0 0.0
        %1063 = vmatpush.msra.mxu0 0.0
        %1064 = vmatpush.msra.mxu0 0.0
        %1065 = vmatpush.msra.mxu0 0.0
        %1066 = vmatpush.msra.mxu0 %v999
        %1067 = vmatpush.msra.mxu0 %v998
        %1068 = vmatmul.f32.gmra.mxu0 %v301
        %v1069 = vpop.f32.mrf.mxu0
        %v1070 = vadd.f32 0.0, %v1069
        %1071 = vmatmul.f32.gmra.mxu0 %v304
        %v1072 = vpop.f32.mrf.mxu0
        %v1073 = vadd.f32 0.0, %v1072
        %1074 = vdwg.mxu0
        %v1076 = vsel %vm299, %v1070, 0
        %v1079 = vsel %vm299, %v1073, 0
        %1081 = vmatpush.msra.mxu0 0.0
        %1082 = vmatpush.msra.mxu0 0.0
        %1083 = vmatpush.msra.mxu0 0.0
        %1084 = vmatpush.msra.mxu0 0.0
        %1085 = vmatpush.msra.mxu0 0.0
        %1086 = vmatpush.msra.mxu0 0.0
        %1087 = vmatpush.msra.mxu0 0.0
        %1088 = vmatpush.msra.mxu0 0.0
        %1089 = vmatpush.msra.mxu0 0.0
        %1090 = vmatpush.msra.mxu0 0.0
        %1091 = vmatpush.msra.mxu0 0.0
        %1092 = vmatpush.msra.mxu0 0.0
        %1093 = vmatpush.msra.mxu0 0.0
        %1094 = vmatpush.msra.mxu0 0.0
        %1095 = vmatpush.msra.mxu0 %v294
        %1096 = vmatpush.msra.mxu0 %v293
        %1097 = vmatmul.f32.gmra.mxu0 %v1076
        %v1098 = vpop.f32.mrf.mxu0
        %v1099 = vadd.f32 0.0, %v1098
        %1100 = vmatmul.f32.gmra.mxu0 %v1079
        %v1101 = vpop.f32.mrf.mxu0
        %v1102 = vadd.f32 0.0, %v1101
        %1103 = vdwg.mxu0
        %v1104 = vmul.f32 %v995, %v995
        %v1105 = vmul.f32 %v996, %v996
        %1106 = vmatpush.msra.mxu0 0.0
        %1107 = vmatpush.msra.mxu0 0.0
        %1108 = vmatpush.msra.mxu0 0.0
        %1109 = vmatpush.msra.mxu0 0.0
        %1110 = vmatpush.msra.mxu0 0.0
        %1111 = vmatpush.msra.mxu0 0.0
        %1112 = vmatpush.msra.mxu0 0.0
        %1113 = vmatpush.msra.mxu0 0.0
        %1114 = vmatpush.msra.mxu0 0.0
        %1115 = vmatpush.msra.mxu0 0.0
        %1116 = vmatpush.msra.mxu0 0.0
        %1117 = vmatpush.msra.mxu0 0.0
        %1118 = vmatpush.msra.mxu0 0.0
        %1119 = vmatpush.msra.mxu0 0.0
        %1120 = vmatpush.msra.mxu0 %v1105
        %1121 = vmatpush.msra.mxu0 %v1104
        %1122 = vmatmul.f32.gmra.mxu0 %v301
        %v1123 = vpop.f32.mrf.mxu0
        %v1124 = vadd.f32 0.0, %v1123
        %1125 = vmatmul.f32.gmra.mxu0 %v304
        %v1126 = vpop.f32.mrf.mxu0
        %v1127 = vadd.f32 0.0, %v1126
        %1128 = vdwg.mxu0
        %v1130 = vsel %vm299, %v1124, 0
        %v1133 = vsel %vm299, %v1127, 0
        %1135 = vmatpush.msra.mxu0 0.0
        %1136 = vmatpush.msra.mxu0 0.0
        %1137 = vmatpush.msra.mxu0 0.0
        %1138 = vmatpush.msra.mxu0 0.0
        %1139 = vmatpush.msra.mxu0 0.0
        %1140 = vmatpush.msra.mxu0 0.0
        %1141 = vmatpush.msra.mxu0 0.0
        %1142 = vmatpush.msra.mxu0 0.0
        %1143 = vmatpush.msra.mxu0 0.0
        %1144 = vmatpush.msra.mxu0 0.0
        %1145 = vmatpush.msra.mxu0 0.0
        %1146 = vmatpush.msra.mxu0 0.0
        %1147 = vmatpush.msra.mxu0 0.0
        %1148 = vmatpush.msra.mxu0 0.0
        %1149 = vmatpush.msra.mxu0 %v294
        %1150 = vmatpush.msra.mxu0 %v293
        %1151 = vmatmul.f32.gmra.mxu0 %v1130
        %v1152 = vpop.f32.mrf.mxu0
        %v1153 = vadd.f32 0.0, %v1152
        %1154 = vmatmul.f32.gmra.mxu0 %v1133
        %v1155 = vpop.f32.mrf.mxu0
        %v1156 = vadd.f32 0.0, %v1155
        %1157 = vdwg.mxu0
        %v1158 = vmul.f32 %v998, %v998
        %v1159 = vmul.f32 %v999, %v999
        %1160 = vmatpush.msra.mxu0 0.0
        %1161 = vmatpush.msra.mxu0 0.0
        %1162 = vmatpush.msra.mxu0 0.0
        %1163 = vmatpush.msra.mxu0 0.0
        %1164 = vmatpush.msra.mxu0 0.0
        %1165 = vmatpush.msra.mxu0 0.0
        %1166 = vmatpush.msra.mxu0 0.0
        %1167 = vmatpush.msra.mxu0 0.0
        %1168 = vmatpush.msra.mxu0 0.0
        %1169 = vmatpush.msra.mxu0 0.0
        %1170 = vmatpush.msra.mxu0 0.0
        %1171 = vmatpush.msra.mxu0 0.0
        %1172 = vmatpush.msra.mxu0 0.0
        %1173 = vmatpush.msra.mxu0 0.0
        %1174 = vmatpush.msra.mxu0 %v1159
        %1175 = vmatpush.msra.mxu0 %v1158
        %1176 = vmatmul.f32.gmra.mxu0 %v301
        %v1177 = vpop.f32.mrf.mxu0
        %v1178 = vadd.f32 0.0, %v1177
        %1179 = vmatmul.f32.gmra.mxu0 %v304
        %v1180 = vpop.f32.mrf.mxu0
        %v1181 = vadd.f32 0.0, %v1180
        %1182 = vdwg.mxu0
        %v1184 = vsel %vm299, %v1178, 0
        %v1187 = vsel %vm299, %v1181, 0
        %1189 = vmatpush.msra.mxu0 0.0
        %1190 = vmatpush.msra.mxu0 0.0
        %1191 = vmatpush.msra.mxu0 0.0
        %1192 = vmatpush.msra.mxu0 0.0
        %1193 = vmatpush.msra.mxu0 0.0
        %1194 = vmatpush.msra.mxu0 0.0
        %1195 = vmatpush.msra.mxu0 0.0
        %1196 = vmatpush.msra.mxu0 0.0
        %1197 = vmatpush.msra.mxu0 0.0
        %1198 = vmatpush.msra.mxu0 0.0
        %1199 = vmatpush.msra.mxu0 0.0
        %1200 = vmatpush.msra.mxu0 0.0
        %1201 = vmatpush.msra.mxu0 0.0
        %1202 = vmatpush.msra.mxu0 0.0
        %1203 = vmatpush.msra.mxu0 %v294
        %1204 = vmatpush.msra.mxu0 %v293
        %1205 = vmatmul.f32.gmra.mxu0 %v1184
        %v1206 = vpop.f32.mrf.mxu0
        %v1207 = vadd.f32 0.0, %v1206
        %1208 = vmatmul.f32.gmra.mxu0 %v1187
        %v1209 = vpop.f32.mrf.mxu0
        %v1210 = vadd.f32 0.0, %v1209
        %1211 = vdwg.mxu0
        %v1212 = vmul.f32 %v995, %v998
        %v1213 = vmul.f32 %v996, %v999
        %1214 = vmatpush.msra.mxu0 0.0
        %1215 = vmatpush.msra.mxu0 0.0
        %1216 = vmatpush.msra.mxu0 0.0
        %1217 = vmatpush.msra.mxu0 0.0
        %1218 = vmatpush.msra.mxu0 0.0
        %1219 = vmatpush.msra.mxu0 0.0
        %1220 = vmatpush.msra.mxu0 0.0
        %1221 = vmatpush.msra.mxu0 0.0
        %1222 = vmatpush.msra.mxu0 0.0
        %1223 = vmatpush.msra.mxu0 0.0
        %1224 = vmatpush.msra.mxu0 0.0
        %1225 = vmatpush.msra.mxu0 0.0
        %1226 = vmatpush.msra.mxu0 0.0
        %1227 = vmatpush.msra.mxu0 0.0
        %1228 = vmatpush.msra.mxu0 %v1213
        %1229 = vmatpush.msra.mxu0 %v1212
        %1230 = vmatmul.f32.gmra.mxu0 %v301
        %v1231 = vpop.f32.mrf.mxu0
        %v1232 = vadd.f32 0.0, %v1231
        %1233 = vmatmul.f32.gmra.mxu0 %v304
        %v1234 = vpop.f32.mrf.mxu0
        %v1235 = vadd.f32 0.0, %v1234
        %1236 = vdwg.mxu0
        %v1238 = vsel %vm299, %v1232, 0
        %v1241 = vsel %vm299, %v1235, 0
        %1243 = vmatpush.msra.mxu0 0.0
        %1244 = vmatpush.msra.mxu0 0.0
        %1245 = vmatpush.msra.mxu0 0.0
        %1246 = vmatpush.msra.mxu0 0.0
        %1247 = vmatpush.msra.mxu0 0.0
        %1248 = vmatpush.msra.mxu0 0.0
        %1249 = vmatpush.msra.mxu0 0.0
        %1250 = vmatpush.msra.mxu0 0.0
        %1251 = vmatpush.msra.mxu0 0.0
        %1252 = vmatpush.msra.mxu0 0.0
        %1253 = vmatpush.msra.mxu0 0.0
        %1254 = vmatpush.msra.mxu0 0.0
        %1255 = vmatpush.msra.mxu0 0.0
        %1256 = vmatpush.msra.mxu0 0.0
        %1257 = vmatpush.msra.mxu0 %v294
        %1258 = vmatpush.msra.mxu0 %v293
        %1259 = vmatmul.f32.gmra.mxu0 %v1238
        %v1260 = vpop.f32.mrf.mxu0
        %v1261 = vadd.f32 0.0, %v1260
        %1262 = vmatmul.f32.gmra.mxu0 %v1241
        %v1263 = vpop.f32.mrf.mxu0
        %v1264 = vadd.f32 0.0, %v1263
        %1265 = vdwg.mxu0
        %v1266 = vmul.f32 %v1047, %v1047
        %v1267 = vmul.f32 %v1050, %v1050
        %v1268 = vmul.f32 %v1099, %v1099
        %v1269 = vmul.f32 %v1102, %v1102
        %v1270 = vmul.f32 %v1047, %v1099
        %v1271 = vmul.f32 %v1050, %v1102
        %v1272 = vsub.f32 %v1153, %v1266
        %v1273 = vsub.f32 %v1156, %v1267
        %v1274 = vsub.f32 %v1207, %v1268
        %v1275 = vsub.f32 %v1210, %v1269
        %v1276 = vsub.f32 %v1261, %v1270
        %v1277 = vsub.f32 %v1264, %v1271
        %v1278 = vmul.f32 %v1270, 2.0
        %v1279 = vmul.f32 %v1271, 2.0
        %v1280 = vadd.f32 %v1278, 0.0001
        %v1281 = vadd.f32 %v1279, 0.0001
        %v1282 = vmul.f32 %v1276, 2.0
        %v1283 = vmul.f32 %v1277, 2.0
        %v1284 = vadd.f32 %v1282, 0.0009
        %v1285 = vadd.f32 %v1283, 0.0009
        %v1286 = vmul.f32 %v1280, %v1284
        %v1287 = vmul.f32 %v1281, %v1285
        %v1288 = vadd.f32 %v1266, %v1268
        %v1289 = vadd.f32 %v1267, %v1269
        %v1290 = vadd.f32 %v1288, 0.0001
        %v1291 = vadd.f32 %v1289, 0.0001
        %v1292 = vadd.f32 %v1272, %v1274
        %v1293 = vadd.f32 %v1273, %v1275
        %v1294 = vadd.f32 %v1292, 0.0009
        %v1295 = vadd.f32 %v1293, 0.0009
        %v1296 = vmul.f32 %v1290, %v1294
        %v1297 = vmul.f32 %v1291, %v1295
        %v1298 = vrcp.pop %v1296
        %v1299 = vmul.f32 %v1296, %v1298
        %v1300 = vsub.f32 1.0, %v1299
        %v1301 = vmul.f32 %v1298, %v1300
        %v1302 = vadd.f32 %v1298, %v1301
        %vm1303 = vweird.f32 %v1296
        %vm1304 = vweird.f32 %v1298
        %vm1305 = vmor %vm1303, %vm1304
        %v1306 = vsel %vm1305, %v1298, %v1302
        %v1307 = vand.u32 2147483647, %v1296
        %vm1308 = vcmp.eq.f32.partialorder %v1307, 8.507059e+37
        %v1309 = vand.u32 %v1296, 2147483648
        %v1310 = vor.u32 1.1754944e-38, %v1309
        %v1311 = vsel %vm1308, %v1310, %v1306
        %v1312 = vrcp.pop %v1297
        %v1313 = vmul.f32 %v1297, %v1312
        %v1314 = vsub.f32 1.0, %v1313
        %v1315 = vmul.f32 %v1312, %v1314
        %v1316 = vadd.f32 %v1312, %v1315
        %vm1317 = vweird.f32 %v1297
        %vm1318 = vweird.f32 %v1312
        %vm1319 = vmor %vm1317, %vm1318
        %v1320 = vsel %vm1319, %v1312, %v1316
        %v1321 = vand.u32 2147483647, %v1297
        %vm1322 = vcmp.eq.f32.partialorder %v1321, 8.507059e+37
        %v1323 = vand.u32 %v1297, 2147483648
        %v1324 = vor.u32 1.1754944e-38, %v1323
        %v1325 = vsel %vm1322, %v1324, %v1320
        %v1326 = vmul.f32 %v1286, %v1311
        %v1327 = vmul.f32 %v1287, %v1325
        %v1328 = vsel %vm299, %v1326, 0.0
        %v1329 = vsel %vm299, %v1327, 0.0
        %v1330 = vadd.f32 %v1328, %v1329
        %1331 = vadd.xlane.f32.xlu0 %v1330
        %v1332 = vpop.xlane.xlu0 %1331
        %v1333 = vrot.slane %v1332, 4
        %v1334 = vadd.f32 %v1332, %v1333
        %v1335 = vrot.slane %v1334, 2
        %v1336 = vadd.f32 %v1334, %v1335
        %v1337 = vrot.slane %v1336, 1
        %v1338 = vadd.f32 %v1336, %v1337
        %s1339 = vtos %v1338
        %s1340 = sadd.f32 %s993, %s1339
        %v1341 = vstv %s1340
        %v1342 = vadd.f32 %v1341, 0.0
        %1343 = vst [vmem:[%s288] sm:$0x1] %v1342
        %s1344 = sand.u32 %s122, 1
        %s1345 = scalar_lea.sflag [#allocation4], %s1344
        %s1346 = sand.u32 %s122, 1
        %s1347 = scalar_lea.vmem [#allocation9], %s1346
        // Predicated region
        $region53: #{tpu_custom_call.1} parent=35 // pred_check
          %p1348 = pneg %p132
        $region54: #{tpu_custom_call.1} parent=35 // pred_check_branch
          %1350 = sbr.rel (%p1348) target = $region56
        $region55: #{tpu_custom_call.1} parent=35 // pred_region
          %1352 = vsyncadd %s1345, 0
          %s1353 = scalar_lea.hbm %s4, %s20
          %s1355 = sshll.u32 %s1347, 4
          %s1356 = int_to_ptr.vmem [resolvable:$true] %s1355
          %s1357 = sshll.u32 %s1353, 4
          %s1358 = int_to_ptr.hbm [resolvable:$true] %s1357
          %1360 = dma.vmem_to_hbm [thread:$0]  %s1356, 16, %s1358, %s1345
        $region56: #{tpu_custom_call.1} parent=35 // pred_fallthru
          _
      $region36: #{tpu_custom_call.1} parent=5 // pred_fallthru
        _
      %p1361 = scmp.le.s32.totalorder 2, %s15
      // Predicated region
      $region57: #{tpu_custom_call.1} parent=5 // pred_check
        %p1362 = pneg %p1361
      $region58: #{tpu_custom_call.1} parent=5 // pred_check_branch
        %1364 = sbr.rel (%p1362) target = $region60
      $region59: #{tpu_custom_call.1} parent=5 // pred_region
        %s1365 = ssub.s32 %s15, 2
        // Predicated region
        $region61: #{tpu_custom_call.1} parent=59 // pred_check
          %p1366 = pneg %p138
        $region62: #{tpu_custom_call.1} parent=59 // pred_check_branch
          %1368 = sbr.rel (%p1366) target = $region64
        $region63: #{tpu_custom_call.1} parent=59 // pred_region
          %s1369 = sand.u32 %s123, 1
          %s1370 = scalar_lea.sflag [#allocation4], %s1369
          %s1371 = sand.u32 %s123, 1
          %s1372 = scalar_lea.vmem [#allocation9], %s1371
          %1374 = dma.done %s1370, 16
        $region64: #{tpu_custom_call.1} parent=59 // pred_fallthru
          _
      $region60: #{tpu_custom_call.1} parent=5 // pred_fallthru
        _
    $region6: #{tpu_custom_call.1} parent=1 // loop_footer
      %s19 = sadd.s32 1, %s15
    $region7: #{tpu_custom_call.1} parent=1 // loop_footer_branch
      %14 = sbr.rel target = $region3
    $region8: #{tpu_custom_call.1} parent=1 // loop_exit
      _
    %1375 = vsyncpa [#allocation3], 1
    %s1376 = scalar_lea.sflag [#allocation3], 1
    %1377 = vsyncpa %s1376, 1
    %1378 = vsyncpa [#allocation6], 1
    %1379 = vsyncpa [#allocation4], 1
    %s1380 = scalar_lea.sflag [#allocation4], 1
    %1381 = vsyncpa %s1380, 1

</llo_original>
